<compile_context>
chip_gen: v7x
topology: tpu7x:2x2x1
jax: 0.10.0
libtpu: 0.0.40
codegen_flags: <defaults>
</compile_context>

<pallas_src>
import functools

import jax
import jax.numpy as jnp
from jax.experimental import pallas as pl
from jax.experimental.pallas import tpu as pltpu

BN_EPS = 1e-5


def _round_up(x, m):
    return ((x + m - 1) // m) * m


def _pad2(a, rows, cols):
    r, c = a.shape
    return jnp.pad(a, ((0, rows - r), (0, cols - c)))


def mlp_predictor_kernel(x_ref, w1_ref, b1_ref, gamma_ref, beta_ref,
                         w2_ref, b2_ref, out_ref,
                         sum_ref, sq_ref, scale_ref, shift_ref,
                         h_cache_ref=None,
                         *, n_valid, batch_tile, cache_h):
    phase = pl.program_id(0)
    tile = pl.program_id(1)

    # Dropout(p=0.0) is the identity.
    # TODO(synk): non-zero dropout would need pltpu.prng_seed/prng_random_bits masking.

    def compute_h():
        # h = relu(x @ w1 + b1): bf16 MXU operands (x cast in-kernel; it streams
        # from HBM once, in its native f32), f32 accumulation.
        x = x_ref[...].astype(jnp.bfloat16)
        h = jnp.dot(x, w1_ref[...], preferred_element_type=jnp.float32)
        return jnp.maximum(h + b1_ref[...], 0.0)

    @pl.when(phase == 0)
    def _phase0():
        h = compute_h()
        if cache_h:
            # Stash h so phase 1 neither re-reads x nor re-runs matmul-1.
            h_cache_ref[tile] = h

        @pl.when(tile == 0)
        def _init():
            sum_ref[...] = jnp.zeros_like(sum_ref)
            sq_ref[...] = jnp.zeros_like(sq_ref)

        # Mask batch-padding rows out of the BN statistics, then accumulate
        # 8 sublane-partial sums per feature (full-vreg VPU adds only; the
        # single 8->1 cross-sublane reduce happens once in phase 1).
        row_ids = tile * batch_tile + jax.lax.broadcasted_iota(
            jnp.int32, h.shape, 0)
        hm = jnp.where(row_ids < n_valid, h, 0.0)
        hm3 = hm.reshape(batch_tile // 8, 8, hm.shape[-1])
        sum_ref[...] += jnp.sum(hm3, axis=0)
        sq_ref[...] += jnp.sum(hm3 * hm3, axis=0)
        # No out_ref write here: the output BlockSpec pins block 0 for all of
        # phase 0, so nothing is flushed to HBM until phase-1 tile 0 overwrites
        # the resident buffer with real data.

    @pl.when(phase == 1)
    def _phase1():
        @pl.when(tile == 0)
        def _fold_bn():
            # Train-mode BatchNorm1d (biased batch variance), folded once into
            # a single per-feature scale/shift reused by every batch tile.
            inv_n = 1.0 / n_valid
            mean = jnp.sum(sum_ref[...], axis=0, keepdims=True) * inv_n
            ex2 = jnp.sum(sq_ref[...], axis=0, keepdims=True) * inv_n
            var = jnp.maximum(ex2 - mean * mean, 0.0)
            scale = gamma_ref[...] * jax.lax.rsqrt(var + BN_EPS)
            scale_ref[...] = scale
            shift_ref[...] = beta_ref[...] - mean * scale

        h = h_cache_ref[tile] if cache_h else compute_h()
        h_norm = (h * scale_ref[...] + shift_ref[...]).astype(w2_ref.dtype)
        out = jnp.dot(h_norm, w2_ref[...], preferred_element_type=jnp.float32)
        out_ref[...] = (out + b2_ref[...]).astype(out_ref.dtype)


def init_params(key, in_feats, hidden_feats, n_tasks, dtype=jnp.float32):
    """Deterministic PyTorch-style init: U(-1/sqrt(fan_in), 1/sqrt(fan_in))."""
    k1, k2, k3, k4 = jax.random.split(key, 4)
    bound1 = 1.0 / jnp.sqrt(in_feats)
    bound2 = 1.0 / jnp.sqrt(hidden_feats)
    return {
        # Linear weights stored pre-transposed as (in, out).
        "w1": jax.random.uniform(k1, (in_feats, hidden_feats), dtype, -bound1, bound1),
        "b1": jax.random.uniform(k2, (1, hidden_feats), dtype, -bound1, bound1),
        "gamma": jnp.ones((1, hidden_feats), dtype),
        "beta": jnp.zeros((1, hidden_feats), dtype),
        "w2": jax.random.uniform(k3, (hidden_feats, n_tasks), dtype, -bound2, bound2),
        "b2": jax.random.uniform(k4, (1, n_tasks), dtype, -bound2, bound2),
    }


def mlp_predictor(feats, params, *, batch_tile=512):
    batch, in_feats = feats.shape
    hidden = params["w1"].shape[1]
    n_tasks = params["w2"].shape[1]

    h_pad = _round_up(hidden, 128)
    t_pad = _round_up(n_tasks, 128)

    # f32 x with an 8-row tile quantum: when batch is already a multiple of 8
    # (or fits one tile) no batch-padding pass over x is needed.
    tb = min(batch_tile, _round_up(batch, 8))
    b_pad = _round_up(batch, tb)
    n_tiles = b_pad // tb

    # x streams unpadded in its native f32 (last dim == full in_feats is a legal
    # block) and is cast to bf16 inside the kernel: no wrapper pad/cast pass.
    x = feats.astype(jnp.float32)
    if b_pad != batch:
        x = jnp.pad(x, ((0, b_pad - batch), (0, 0)))

    # Small, parameter-sized pads only (lane-dense weights / per-feature rows).
    w1_p = _pad2(params["w1"].astype(jnp.bfloat16), in_feats, h_pad)
    b1_p = _pad2(params["b1"].astype(jnp.float32), 1, h_pad)
    g_p = _pad2(params["gamma"].astype(jnp.float32), 1, h_pad)
    be_p = _pad2(params["beta"].astype(jnp.float32), 1, h_pad)
    w2_p = _pad2(params["w2"].astype(jnp.bfloat16), h_pad, t_pad)
    b2_p = _pad2(params["b2"].astype(jnp.float32), 1, t_pad)

    # VMEM accounting: double-buffered x/out tiles + resident bf16 weights +
    # moment/scale scratch + f32 temporaries.  The h cache is enabled only when
    # the total stays comfortably under v7x's 64 MiB physical VMEM (also safe
    # on v5e/v6e's 128 MiB).
    base_bytes = (2 * tb * in_feats * 4 + 2 * tb * t_pad * 4
                  + 2 * (in_feats * h_pad + h_pad * t_pad) * 2
                  + 2 * (3 * h_pad + t_pad) * 4
                  + (8 + 8 + 2) * h_pad * 4
                  + 6 * tb * h_pad * 4)
    cache_bytes = b_pad * h_pad * 4
    cache_h = cache_bytes <= max(0, (40 << 20) - 2 * base_bytes)
    vmem_limit = int(min(max(2 * base_bytes + (cache_bytes if cache_h else 0)
                             + (8 << 20), 32 << 20), 56 << 20))

    kernel = functools.partial(mlp_predictor_kernel, n_valid=batch,
                               batch_tile=tb, cache_h=cache_h)

    def const(shape):
        return pl.BlockSpec(shape, lambda p, i: (0, 0))

    if cache_h:
        # Phase 1 reads h from the VMEM cache, so pin the x block to 0 during
        # phase 1 (no redundant x re-fetches from HBM).
        x_spec = pl.BlockSpec((tb, in_feats), lambda p, i: (i * (1 - p), 0))
    else:
        x_spec = pl.BlockSpec((tb, in_feats), lambda p, i: (i, 0))

    scratch = [pltpu.VMEM((8, h_pad), jnp.float32),   # sublane-partial sum(h)
               pltpu.VMEM((8, h_pad), jnp.float32),   # sublane-partial sum(h^2)
               pltpu.VMEM((1, h_pad), jnp.float32),   # folded BN scale
               pltpu.VMEM((1, h_pad), jnp.float32)]   # folded BN shift
    if cache_h:
        scratch.append(pltpu.VMEM((n_tiles, tb, h_pad), jnp.float32))  # h cache

    out_p = pl.pallas_call(
        kernel,
        out_shape=jax.ShapeDtypeStruct((b_pad, t_pad), jnp.float32),
        grid_spec=pltpu.PrefetchScalarGridSpec(
            num_scalar_prefetch=0,
            grid=(2, n_tiles),  # (phase, batch tile)
            in_specs=[
                x_spec,                        # x tile (f32, cast in-kernel)
                const((in_feats, h_pad)),      # w1 (VMEM-resident)
                const((1, h_pad)),             # b1
                const((1, h_pad)),             # gamma
                const((1, h_pad)),             # beta
                const((h_pad, t_pad)),         # w2 (VMEM-resident)
                const((1, t_pad)),             # b2
            ],
            # Phase 0 pins output block 0 (it is never flushed before phase-1
            # tile 0 overwrites it), so each output block hits HBM exactly once.
            out_specs=pl.BlockSpec((tb, t_pad), lambda p, i: (i * p, 0)),
            scratch_shapes=scratch,
        ),
        compiler_params=pltpu.CompilerParams(
            # Both axes sequential: phase orders the BN reduction before its
            # use, and the batch axis accumulates into shared VMEM scratch.
            # TODO(synk): for v7x megacore, keep per-core partial BN sums and
            # combine them so the batch axis can be marked "parallel".
            dimension_semantics=("arbitrary", "arbitrary"),
            vmem_limit_bytes=vmem_limit,
        ),
    )(x, w1_p, b1_p, g_p, be_p, w2_p, b2_p)

    return out_p[:batch, :n_tasks].astype(feats.dtype)


def mlp_predictor_ref(feats, params):
    """Pure-JAX reference mirroring the kernel's bf16-operand / f32-accumulate math."""
    x = feats.astype(jnp.bfloat16)
    h = jnp.dot(x, params["w1"].astype(jnp.bfloat16),
                preferred_element_type=jnp.float32) + params["b1"].astype(jnp.float32)
    h = jnp.maximum(h, 0.0)
    mean = jnp.mean(h, axis=0, keepdims=True)
    var = jnp.mean((h - mean) ** 2, axis=0, keepdims=True)
    h = params["gamma"] * (h - mean) / jnp.sqrt(var + BN_EPS) + params["beta"]
    out = jnp.dot(h.astype(jnp.bfloat16), params["w2"].astype(jnp.bfloat16),
                  preferred_element_type=jnp.float32) + params["b2"]
    return out.astype(feats.dtype)


if __name__ == "__main__":
    # Small shapes consistent with the module; batch=200 exercises a non-128
    # batch extent (single 200-row tile, no padding pass over x).
    batch, in_feats, hidden_feats, n_tasks = 200, 48, 96, 10

    key = jax.random.PRNGKey(0)
    k_feats, k_params = jax.random.split(key)
    feats = jax.random.normal(k_feats, (batch, in_feats), jnp.float32)
    params = init_params(k_params, in_feats, hidden_feats, n_tasks)

    out = jax.block_until_ready(mlp_predictor(feats, params))
    ref = mlp_predictor_ref(feats, params)

    assert out.shape == (batch, n_tasks), out.shape
    assert jnp.allclose(out, ref, atol=1e-2, rtol=1e-2), float(
        jnp.max(jnp.abs(out - ref)))

    print("KERNEL_OK")
</pallas_src>

<mosaic_0001>
module attributes {stable_mosaic.version = 11 : i64} {
  func.func @mlp_predictor_kernel(%arg0: i32, %arg1: i32, %arg2: memref<200x48xf32, #tpu.memory_space<vmem>>, %arg3: memref<48x128xbf16, #tpu.memory_space<vmem>>, %arg4: memref<1x128xf32, #tpu.memory_space<vmem>>, %arg5: memref<1x128xf32, #tpu.memory_space<vmem>>, %arg6: memref<1x128xf32, #tpu.memory_space<vmem>>, %arg7: memref<128x128xbf16, #tpu.memory_space<vmem>>, %arg8: memref<1x128xf32, #tpu.memory_space<vmem>>, %arg9: memref<200x128xf32, #tpu.memory_space<vmem>>, %arg10: memref<8x128xf32, #tpu.memory_space<vmem>>, %arg11: memref<8x128xf32, #tpu.memory_space<vmem>>, %arg12: memref<1x128xf32, #tpu.memory_space<vmem>>, %arg13: memref<1x128xf32, #tpu.memory_space<vmem>>, %arg14: memref<1x200x128xf32, #tpu.memory_space<vmem>>) attributes {dimension_semantics = [#tpu.dimension_semantics<arbitrary>, #tpu.dimension_semantics<arbitrary>], iteration_bounds = array<i64: 2, 1>, scalar_prefetch = 0 : i64, scratch_operands = 5 : i64, tpu.core_type = #tpu.core_type<tc>, window_params = [{transform_indices = @transform_0, window_bounds = array<i64: 200, 48>}, {pipeline_mode = #tpu.pipeline_mode<synchronous>, transform_indices = @transform_1, window_bounds = array<i64: 48, 128>}, {pipeline_mode = #tpu.pipeline_mode<synchronous>, transform_indices = @transform_2, window_bounds = array<i64: 1, 128>}, {pipeline_mode = #tpu.pipeline_mode<synchronous>, transform_indices = @transform_3, window_bounds = array<i64: 1, 128>}, {pipeline_mode = #tpu.pipeline_mode<synchronous>, transform_indices = @transform_4, window_bounds = array<i64: 1, 128>}, {pipeline_mode = #tpu.pipeline_mode<synchronous>, transform_indices = @transform_5, window_bounds = array<i64: 128, 128>}, {pipeline_mode = #tpu.pipeline_mode<synchronous>, transform_indices = @transform_6, window_bounds = array<i64: 1, 128>}, {transform_indices = @transform_7, window_bounds = array<i64: 200, 128>}]} {
    %c0_i32 = arith.constant 0 : i32
    %0 = arith.cmpi eq, %arg0, %c0_i32 : i32
    %1 = arith.extui %0 : i1 to i32
    %c0_i32_0 = arith.constant 0 : i32
    %2 = arith.cmpi ne, %1, %c0_i32_0 : i32
    scf.if %2 {
      %c0 = arith.constant 0 : index
      %c0_2 = arith.constant 0 : index
      %6 = vector.load %arg2[%c0, %c0_2] : memref<200x48xf32, #tpu.memory_space<vmem>>, vector<200x48xf32>
      %7 = arith.truncf %6 : vector<200x48xf32> to vector<200x48xbf16>
      %c0_3 = arith.constant 0 : index
      %c0_4 = arith.constant 0 : index
      %8 = vector.load %arg3[%c0_3, %c0_4] : memref<48x128xbf16, #tpu.memory_space<vmem>>, vector<48x128xbf16>
      %cst = arith.constant dense<0.000000e+00> : vector<200x128xf32>
      %9 = tpu.matmul %7, %8, %cst {dimension_numbers = #tpu.dot_dimension_numbers<[1], [0], [0], [1], [0, 0, 1, 1], [], []>} : vector<200x48xbf16>, vector<48x128xbf16>, vector<200x128xf32> -> vector<200x128xf32>
      %c0_5 = arith.constant 0 : index
      %c0_6 = arith.constant 0 : index
      %10 = vector.load %arg4[%c0_5, %c0_6] : memref<1x128xf32, #tpu.memory_space<vmem>>, vector<1x128xf32>
      %11 = vector.broadcast %10 : vector<1x128xf32> to vector<200x128xf32>
      %12 = arith.addf %9, %11 : vector<200x128xf32>
      %cst_7 = arith.constant 0.000000e+00 : f32
      %13 = vector.broadcast %cst_7 : f32 to vector<200x128xf32>
      %14 = arith.maximumf %12, %13 : vector<200x128xf32>
      %15 = arith.index_cast %arg1 : i32 to index
      %c0_8 = arith.constant 0 : index
      %c0_9 = arith.constant 0 : index
      %16 = vector.load %arg14[%15, %c0_8, %c0_9] : memref<1x200x128xf32, #tpu.memory_space<vmem>>, vector<1x200x128xf32>
      %17 = vector.shape_cast %16 : vector<1x200x128xf32> to vector<200x128xf32>
      %18 = vector.shape_cast %14 : vector<200x128xf32> to vector<1x200x128xf32>
      tpu.vector_store %arg14[%15, %c0_8, %c0_9], %18 {strides = array<i32>} : memref<1x200x128xf32, #tpu.memory_space<vmem>>, vector<1x200x128xf32>,
      %c0_i32_10 = arith.constant 0 : i32
      %19 = arith.cmpi eq, %arg1, %c0_i32_10 : i32
      %20 = arith.extui %19 : i1 to i32
      %c0_i32_11 = arith.constant 0 : i32
      %21 = arith.cmpi ne, %20, %c0_i32_11 : i32
      scf.if %21 {
        %cst_24 = arith.constant 0.000000e+00 : f32
        %40 = vector.broadcast %cst_24 : f32 to vector<8x128xf32>
        %c0_25 = arith.constant 0 : index
        %c0_26 = arith.constant 0 : index
        %41 = vector.load %arg10[%c0_25, %c0_26] : memref<8x128xf32, #tpu.memory_space<vmem>>, vector<8x128xf32>
        tpu.vector_store %arg10[%c0_25, %c0_26], %40 {strides = array<i32>} : memref<8x128xf32, #tpu.memory_space<vmem>>, vector<8x128xf32>,
        %cst_27 = arith.constant 0.000000e+00 : f32
        %42 = vector.broadcast %cst_27 : f32 to vector<8x128xf32>
        %c0_28 = arith.constant 0 : index
        %c0_29 = arith.constant 0 : index
        %43 = vector.load %arg11[%c0_28, %c0_29] : memref<8x128xf32, #tpu.memory_space<vmem>>, vector<8x128xf32>
        tpu.vector_store %arg11[%c0_28, %c0_29], %42 {strides = array<i32>} : memref<8x128xf32, #tpu.memory_space<vmem>>, vector<8x128xf32>,
      } else {
      }
      %c200_i32 = arith.constant 200 : i32
      %22 = arith.muli %arg1, %c200_i32 : i32
      %23 = tpu.iota {dimensions = array<i32: 0>} : vector<200x128xi32>
      %24 = vector.broadcast %22 : i32 to vector<200x128xi32>
      %25 = arith.addi %24, %23 : vector<200x128xi32>
      %c200_i32_12 = arith.constant 200 : i32
      %26 = vector.broadcast %c200_i32_12 : i32 to vector<200x128xi32>
      %27 = arith.cmpi slt, %25, %26 : vector<200x128xi32>
      %cst_13 = arith.constant 0.000000e+00 : f32
      %28 = vector.broadcast %cst_13 : f32 to vector<200x128xf32>
      %29 = arith.select %27, %14, %28 : vector<200x128xi1>, vector<200x128xf32>
      %30 = vector.shape_cast %29 : vector<200x128xf32> to vector<25x8x128xf32>
      %c0_14 = arith.constant 0 : index
      %c0_15 = arith.constant 0 : index
      %31 = vector.load %arg10[%c0_14, %c0_15] : memref<8x128xf32, #tpu.memory_space<vmem>>, vector<8x128xf32>
      %cst_16 = arith.constant dense<0.000000e+00> : vector<8x128xf32>
      %32 = vector.multi_reduction <add>, %30, %cst_16 [0] : vector<25x8x128xf32> to vector<8x128xf32>
      %33 = arith.addf %31, %32 : vector<8x128xf32>
      %c0_17 = arith.constant 0 : index
      %c0_18 = arith.constant 0 : index
      %34 = vector.load %arg10[%c0_17, %c0_18] : memref<8x128xf32, #tpu.memory_space<vmem>>, vector<8x128xf32>
      tpu.vector_store %arg10[%c0_17, %c0_18], %33 {strides = array<i32>} : memref<8x128xf32, #tpu.memory_space<vmem>>, vector<8x128xf32>,
      %c0_19 = arith.constant 0 : index
      %c0_20 = arith.constant 0 : index
      %35 = vector.load %arg11[%c0_19, %c0_20] : memref<8x128xf32, #tpu.memory_space<vmem>>, vector<8x128xf32>
      %36 = arith.mulf %30, %30 : vector<25x8x128xf32>
      %cst_21 = arith.constant dense<0.000000e+00> : vector<8x128xf32>
      %37 = vector.multi_reduction <add>, %36, %cst_21 [0] : vector<25x8x128xf32> to vector<8x128xf32>
      %38 = arith.addf %35, %37 : vector<8x128xf32>
      %c0_22 = arith.constant 0 : index
      %c0_23 = arith.constant 0 : index
      %39 = vector.load %arg11[%c0_22, %c0_23] : memref<8x128xf32, #tpu.memory_space<vmem>>, vector<8x128xf32>
      tpu.vector_store %arg11[%c0_22, %c0_23], %38 {strides = array<i32>} : memref<8x128xf32, #tpu.memory_space<vmem>>, vector<8x128xf32>,
    } else {
    }
    %c1_i32 = arith.constant 1 : i32
    %3 = arith.cmpi eq, %arg0, %c1_i32 : i32
    %4 = arith.extui %3 : i1 to i32
    %c0_i32_1 = arith.constant 0 : i32
    %5 = arith.cmpi ne, %4, %c0_i32_1 : i32
    scf.if %5 {
      %c0_i32_2 = arith.constant 0 : i32
      %6 = arith.cmpi eq, %arg1, %c0_i32_2 : i32
      %7 = arith.extui %6 : i1 to i32
      %c0_i32_3 = arith.constant 0 : i32
      %8 = arith.cmpi ne, %7, %c0_i32_3 : i32
      scf.if %8 {
        %c0_15 = arith.constant 0 : index
        %c0_16 = arith.constant 0 : index
        %25 = vector.load %arg10[%c0_15, %c0_16] : memref<8x128xf32, #tpu.memory_space<vmem>>, vector<8x128xf32>
        %cst_17 = arith.constant dense<0.000000e+00> : vector<128xf32>
        %26 = vector.multi_reduction <add>, %25, %cst_17 [0] : vector<8x128xf32> to vector<128xf32>
        %27 = vector.shape_cast %26 : vector<128xf32> to vector<1x128xf32>
        %cst_18 = arith.constant 5.000000e-03 : f32
        %28 = vector.broadcast %cst_18 : f32 to vector<1x128xf32>
        %29 = arith.mulf %27, %28 : vector<1x128xf32>
        %c0_19 = arith.constant 0 : index
        %c0_20 = arith.constant 0 : index
        %30 = vector.load %arg11[%c0_19, %c0_20] : memref<8x128xf32, #tpu.memory_space<vmem>>, vector<8x128xf32>
        %cst_21 = arith.constant dense<0.000000e+00> : vector<128xf32>
        %31 = vector.multi_reduction <add>, %30, %cst_21 [0] : vector<8x128xf32> to vector<128xf32>
        %32 = vector.shape_cast %31 : vector<128xf32> to vector<1x128xf32>
        %cst_22 = arith.constant 5.000000e-03 : f32
        %33 = vector.broadcast %cst_22 : f32 to vector<1x128xf32>
        %34 = arith.mulf %32, %33 : vector<1x128xf32>
        %35 = arith.mulf %29, %29 : vector<1x128xf32>
        %36 = arith.subf %34, %35 : vector<1x128xf32>
        %cst_23 = arith.constant 0.000000e+00 : f32
        %37 = vector.broadcast %cst_23 : f32 to vector<1x128xf32>
        %38 = arith.maximumf %36, %37 : vector<1x128xf32>
        %c0_24 = arith.constant 0 : index
        %c0_25 = arith.constant 0 : index
        %39 = vector.load %arg5[%c0_24, %c0_25] : memref<1x128xf32, #tpu.memory_space<vmem>>, vector<1x128xf32>
        %cst_26 = arith.constant 9.99999974E-6 : f32
        %40 = vector.broadcast %cst_26 : f32 to vector<1x128xf32>
        %41 = arith.addf %38, %40 : vector<1x128xf32>
        %42 = math.rsqrt %41 : vector<1x128xf32>
        %43 = arith.mulf %39, %42 : vector<1x128xf32>
        %c0_27 = arith.constant 0 : index
        %c0_28 = arith.constant 0 : index
        %44 = vector.load %arg12[%c0_27, %c0_28] : memref<1x128xf32, #tpu.memory_space<vmem>>, vector<1x128xf32>
        tpu.vector_store %arg12[%c0_27, %c0_28], %43 {strides = array<i32>} : memref<1x128xf32, #tpu.memory_space<vmem>>, vector<1x128xf32>,
        %c0_29 = arith.constant 0 : index
        %c0_30 = arith.constant 0 : index
        %45 = vector.load %arg6[%c0_29, %c0_30] : memref<1x128xf32, #tpu.memory_space<vmem>>, vector<1x128xf32>
        %46 = arith.mulf %29, %43 : vector<1x128xf32>
        %47 = arith.subf %45, %46 : vector<1x128xf32>
        %c0_31 = arith.constant 0 : index
        %c0_32 = arith.constant 0 : index
        %48 = vector.load %arg13[%c0_31, %c0_32] : memref<1x128xf32, #tpu.memory_space<vmem>>, vector<1x128xf32>
        tpu.vector_store %arg13[%c0_31, %c0_32], %47 {strides = array<i32>} : memref<1x128xf32, #tpu.memory_space<vmem>>, vector<1x128xf32>,
      } else {
      }
      %9 = arith.index_cast %arg1 : i32 to index
      %c0 = arith.constant 0 : index
      %c0_4 = arith.constant 0 : index
      %10 = vector.load %arg14[%9, %c0, %c0_4] : memref<1x200x128xf32, #tpu.memory_space<vmem>>, vector<1x200x128xf32>
      %11 = vector.shape_cast %10 : vector<1x200x128xf32> to vector<200x128xf32>
      %c0_5 = arith.constant 0 : index
      %c0_6 = arith.constant 0 : index
      %12 = vector.load %arg12[%c0_5, %c0_6] : memref<1x128xf32, #tpu.memory_space<vmem>>, vector<1x128xf32>
      %13 = vector.broadcast %12 : vector<1x128xf32> to vector<200x128xf32>
      %14 = arith.mulf %11, %13 : vector<200x128xf32>
      %c0_7 = arith.constant 0 : index
      %c0_8 = arith.constant 0 : index
      %15 = vector.load %arg13[%c0_7, %c0_8] : memref<1x128xf32, #tpu.memory_space<vmem>>, vector<1x128xf32>
      %16 = vector.broadcast %15 : vector<1x128xf32> to vector<200x128xf32>
      %17 = arith.addf %14, %16 : vector<200x128xf32>
      %18 = arith.truncf %17 : vector<200x128xf32> to vector<200x128xbf16>
      %c0_9 = arith.constant 0 : index
      %c0_10 = arith.constant 0 : index
      %19 = vector.load %arg7[%c0_9, %c0_10] : memref<128x128xbf16, #tpu.memory_space<vmem>>, vector<128x128xbf16>
      %cst = arith.constant dense<0.000000e+00> : vector<200x128xf32>
      %20 = tpu.matmul %18, %19, %cst {dimension_numbers = #tpu.dot_dimension_numbers<[1], [0], [0], [1], [0, 0, 1, 1], [], []>} : vector<200x128xbf16>, vector<128x128xbf16>, vector<200x128xf32> -> vector<200x128xf32>
      %c0_11 = arith.constant 0 : index
      %c0_12 = arith.constant 0 : index
      %21 = vector.load %arg8[%c0_11, %c0_12] : memref<1x128xf32, #tpu.memory_space<vmem>>, vector<1x128xf32>
      %22 = vector.broadcast %21 : vector<1x128xf32> to vector<200x128xf32>
      %23 = arith.addf %20, %22 : vector<200x128xf32>
      %c0_13 = arith.constant 0 : index
      %c0_14 = arith.constant 0 : index
      %24 = vector.load %arg9[%c0_13, %c0_14] : memref<200x128xf32, #tpu.memory_space<vmem>>, vector<200x128xf32>
      tpu.vector_store %arg9[%c0_13, %c0_14], %23 {strides = array<i32>} : memref<200x128xf32, #tpu.memory_space<vmem>>, vector<200x128xf32>,
    } else {
    }
    return
  }
  func.func @transform_0(%arg0: i32, %arg1: i32) -> (i32, i32) {
    %c1_i32 = arith.constant 1 : i32
    %0 = arith.subi %c1_i32, %arg0 : i32
    %1 = arith.muli %arg1, %0 : i32
    %c0_i32 = arith.constant 0 : i32
    %c0_i32_0 = arith.constant 0 : i32
    return %1, %c0_i32 : i32, i32
  }
  func.func @transform_1(%arg0: i32, %arg1: i32) -> (i32, i32) {
    %c0_i32 = arith.constant 0 : i32
    %c0_i32_0 = arith.constant 0 : i32
    %c0_i32_1 = arith.constant 0 : i32
    return %c0_i32, %c0_i32_0 : i32, i32
  }
  func.func @transform_2(%arg0: i32, %arg1: i32) -> (i32, i32) {
    %c0_i32 = arith.constant 0 : i32
    %c0_i32_0 = arith.constant 0 : i32
    %c0_i32_1 = arith.constant 0 : i32
    return %c0_i32, %c0_i32_0 : i32, i32
  }
  func.func @transform_3(%arg0: i32, %arg1: i32) -> (i32, i32) {
    %c0_i32 = arith.constant 0 : i32
    %c0_i32_0 = arith.constant 0 : i32
    %c0_i32_1 = arith.constant 0 : i32
    return %c0_i32, %c0_i32_0 : i32, i32
  }
  func.func @transform_4(%arg0: i32, %arg1: i32) -> (i32, i32) {
    %c0_i32 = arith.constant 0 : i32
    %c0_i32_0 = arith.constant 0 : i32
    %c0_i32_1 = arith.constant 0 : i32
    return %c0_i32, %c0_i32_0 : i32, i32
  }
  func.func @transform_5(%arg0: i32, %arg1: i32) -> (i32, i32) {
    %c0_i32 = arith.constant 0 : i32
    %c0_i32_0 = arith.constant 0 : i32
    %c0_i32_1 = arith.constant 0 : i32
    return %c0_i32, %c0_i32_0 : i32, i32
  }
  func.func @transform_6(%arg0: i32, %arg1: i32) -> (i32, i32) {
    %c0_i32 = arith.constant 0 : i32
    %c0_i32_0 = arith.constant 0 : i32
    %c0_i32_1 = arith.constant 0 : i32
    return %c0_i32, %c0_i32_0 : i32, i32
  }
  func.func @transform_7(%arg0: i32, %arg1: i32) -> (i32, i32) {
    %0 = arith.muli %arg1, %arg0 : i32
    %c0_i32 = arith.constant 0 : i32
    %c0_i32_0 = arith.constant 0 : i32
    return %0, %c0_i32 : i32, i32
  }
}

</mosaic_0001>

<llo_original>
// kernel: tpu_custom_call.1
$region0: #{tpu_custom_call.1}
  #allocation0 [shape = 'u32[]', space=smem, size = 0x4, offset = 0x4, fixed_abs, tag = 'smem constant byte address 0x4 - core index']
  #allocation1 [shape = 'u32[144,128]{1,0:T(1,128)}', space=vmem, size = 0x12000, scoped, tag = 'internal scratch']
  #allocation2 [shape = 'f32[8,128]{1,0:T(8,128)}', space=vmem, size = 0x1000, scoped, tag = 'scratch operand']
  #allocation3 [shape = 'f32[8,128]{1,0:T(8,128)}', space=vmem, size = 0x1000, scoped, tag = 'scratch operand']
  #allocation4 [shape = 'f32[1,128]{1,0:T(1,128)}', space=vmem, size = 0x200, scoped, tag = 'scratch operand']
  #allocation5 [shape = 'f32[1,128]{1,0:T(1,128)}', space=vmem, size = 0x200, scoped, tag = 'scratch operand']
  #allocation6 [shape = 'f32[1,200,128]{2,1,0:T(8,128)}', space=vmem, size = 0x19000, scoped, tag = 'scratch operand']
  %s0 = inlined_call_operand.vmem [shape: f32[200,48], index: 0, kind: input, shape index: {}]
  %s1 = inlined_call_operand.vmem [shape: bf16[48,128], index: 1, kind: input, shape index: {}]
  %s2 = inlined_call_operand.vmem [shape: f32[1,128], index: 2, kind: input, shape index: {}]
  %s3 = inlined_call_operand.vmem [shape: f32[1,128], index: 3, kind: input, shape index: {}]
  %s4 = inlined_call_operand.vmem [shape: f32[1,128], index: 4, kind: input, shape index: {}]
  %s5 = inlined_call_operand.vmem [shape: bf16[128,128], index: 5, kind: input, shape index: {}]
  %s6 = inlined_call_operand.vmem [shape: f32[1,128], index: 6, kind: input, shape index: {}]
  %s7 = inlined_call_operand.hbm [shape: f32[200,128], index: 7, kind: output, shape index: {}]
  %s8 = sld [smem:[#allocation0]]
  $region77: #{tpu_custom_call.1} parent=0
    _
  %s10 = ssub.s32 1, %s8
  %s11 = scalar_select 0, %s10, %s8
  $region1: #{tpu_custom_call.1} parent=0
    #allocation7 [shape = 'u8[204800]{0}', space=vmem, size = 0x32000, scoped, tag = 'output window, operand 0']
    #allocation8 [shape = 's32[2]{0}', space=sflag, size = 0x8, scoped, tag = 'scoped memory for tpu_custom_call.1']
    %12 = vsyncpa [#allocation8], 0
    %s13 = scalar_lea.sflag [#allocation8], 1
    %14 = vsyncpa %s13, 0
    loop: start=0, step=1, limit=4
    $region2: #{tpu_custom_call.1} parent=1 // loop_pre_header
      _
    $region3: #{tpu_custom_call.1} parent=1 // loop_header
      %s16 = sphi 0, %s20
      %p17 = scmp.ge.s32.totalorder %s16, 4
      %s23 = sphi 0, %s35
      %s24 = sphi 0, %s31
      %s25 = sphi 0, %s23
      %s26 = sphi 0, %s24
      %s27 = sphi 0, %s25
      %s28 = sphi 0, %s26
      %s42 = sphi 0, %s44
      %s45 = sphi 0, %s42
      %s46 = sphi 0, %s45
      %s62 = sphi 0, %s46
      %s66 = sphi 0, %s66
      %s68 = sphi 0, %s66
      %s69 = sphi 0, %s68
      %s83 = sphi 0, %s69
      %s87 = sphi 0, %s87
      %s89 = sphi 0, %s87
      %s90 = sphi 0, %s89
      %s104 = sphi 0, %s90
      %s108 = sphi 0, %s108
      %s110 = sphi 0, %s108
      %s111 = sphi 0, %s110
      %s125 = sphi 0, %s111
      %s129 = sphi 0, %s129
      %s131 = sphi 0, %s129
      %s132 = sphi 0, %s131
      %s146 = sphi 0, %s132
      %s150 = sphi 0, %s150
      %s152 = sphi 0, %s150
      %s153 = sphi 0, %s152
      %s167 = sphi 0, %s153
      %s171 = sphi 0, %s171
      %s173 = sphi 0, %s171
      %s174 = sphi 0, %s173
      %s188 = sphi 0, %s174
      %s196 = sphi 0, %s198
      %s199 = sphi 0, %s196
      %s200 = sphi 0, %s199
      %s216 = sphi 0, %s200
    $region4: #{tpu_custom_call.1} parent=1 // loop_header_branch
      %19 = sbr.rel (%p17) target = $region8
    $region5: #{tpu_custom_call.1} parent=1 // loop_body
      %s21 = ssub.s32 %s16, 1
      %s22 = ssub.s32 %s16, 2
      %s29 = sadd.s32 1, %s24
      %p30 = scmp.ge.s32.totalorder %s29, 1
      %s31 = scalar_select %p30, 0, %s29
      %s32 = sadd.s32 1, %s23
      %s33 = scalar_select %p30, %s32, %s23
      %p34 = scmp.ge.s32.totalorder %s33, 2
      %s35 = scalar_select %p34, 0, %s33
      %s36 = ssub.s32 1, %s23
      %s37 = smul.u32 %s24, %s36
      %s38 = ssub.s32 1, %s35
      %s39 = smul.u32 %s31, %s38
      %s40 = ssub.s32 %s37, %s39
      %p41 = scmp.eq.s32.totalorder %s40, 0
      %s43 = sadd.s32 %s42, 1
      %s44 = scalar_select %p41, %s42, %s43
      %p47 = pneg %p41
      %p48 = scmp.eq.s32.totalorder %s16, 1
      %p49 = por %p47, %p48
      %p50 = scmp.ne.s32.totalorder %s42, %s45
      %p51 = scmp.eq.s32.totalorder %s16, 0
      %p52 = por %p50, %p51
      %p53 = scmp.ne.s32.totalorder %s42, %s45
      %p54 = scmp.eq.s32.totalorder %s21, 1
      %p55 = por %p53, %p54
      %p56 = scmp.ne.s32.totalorder %s45, %s46
      %p57 = scmp.eq.s32.totalorder %s21, 0
      %p58 = por %p56, %p57
      %p59 = scmp.ne.s32.totalorder %s45, %s46
      %p60 = scmp.eq.s32.totalorder %s22, 1
      %p61 = por %p59, %p60
      %p63 = scmp.ne.s32.totalorder %s46, %s62
      %p64 = scmp.eq.s32.totalorder %s22, 0
      %p65 = por %p63, %p64
      %s67 = sadd.s32 %s66, 1
      %p70 = scmp.eq.s32.totalorder %s16, 1
      %p71 = scmp.ne.s32.totalorder %s66, %s68
      %p72 = scmp.eq.s32.totalorder %s16, 0
      %p73 = por %p71, %p72
      %p74 = scmp.ne.s32.totalorder %s66, %s68
      %p75 = scmp.eq.s32.totalorder %s21, 1
      %p76 = por %p74, %p75
      %p77 = scmp.ne.s32.totalorder %s68, %s69
      %p78 = scmp.eq.s32.totalorder %s21, 0
      %p79 = por %p77, %p78
      %p80 = scmp.ne.s32.totalorder %s68, %s69
      %p81 = scmp.eq.s32.totalorder %s22, 1
      %p82 = por %p80, %p81
      %p84 = scmp.ne.s32.totalorder %s69, %s83
      %p85 = scmp.eq.s32.totalorder %s22, 0
      %p86 = por %p84, %p85
      %s88 = sadd.s32 %s87, 1
      %p91 = scmp.eq.s32.totalorder %s16, 1
      %p92 = scmp.ne.s32.totalorder %s87, %s89
      %p93 = scmp.eq.s32.totalorder %s16, 0
      %p94 = por %p92, %p93
      %p95 = scmp.ne.s32.totalorder %s87, %s89
      %p96 = scmp.eq.s32.totalorder %s21, 1
      %p97 = por %p95, %p96
      %p98 = scmp.ne.s32.totalorder %s89, %s90
      %p99 = scmp.eq.s32.totalorder %s21, 0
      %p100 = por %p98, %p99
      %p101 = scmp.ne.s32.totalorder %s89, %s90
      %p102 = scmp.eq.s32.totalorder %s22, 1
      %p103 = por %p101, %p102
      %p105 = scmp.ne.s32.totalorder %s90, %s104
      %p106 = scmp.eq.s32.totalorder %s22, 0
      %p107 = por %p105, %p106
      %s109 = sadd.s32 %s108, 1
      %p112 = scmp.eq.s32.totalorder %s16, 1
      %p113 = scmp.ne.s32.totalorder %s108, %s110
      %p114 = scmp.eq.s32.totalorder %s16, 0
      %p115 = por %p113, %p114
      %p116 = scmp.ne.s32.totalorder %s108, %s110
      %p117 = scmp.eq.s32.totalorder %s21, 1
      %p118 = por %p116, %p117
      %p119 = scmp.ne.s32.totalorder %s110, %s111
      %p120 = scmp.eq.s32.totalorder %s21, 0
      %p121 = por %p119, %p120
      %p122 = scmp.ne.s32.totalorder %s110, %s111
      %p123 = scmp.eq.s32.totalorder %s22, 1
      %p124 = por %p122, %p123
      %p126 = scmp.ne.s32.totalorder %s111, %s125
      %p127 = scmp.eq.s32.totalorder %s22, 0
      %p128 = por %p126, %p127
      %s130 = sadd.s32 %s129, 1
      %p133 = scmp.eq.s32.totalorder %s16, 1
      %p134 = scmp.ne.s32.totalorder %s129, %s131
      %p135 = scmp.eq.s32.totalorder %s16, 0
      %p136 = por %p134, %p135
      %p137 = scmp.ne.s32.totalorder %s129, %s131
      %p138 = scmp.eq.s32.totalorder %s21, 1
      %p139 = por %p137, %p138
      %p140 = scmp.ne.s32.totalorder %s131, %s132
      %p141 = scmp.eq.s32.totalorder %s21, 0
      %p142 = por %p140, %p141
      %p143 = scmp.ne.s32.totalorder %s131, %s132
      %p144 = scmp.eq.s32.totalorder %s22, 1
      %p145 = por %p143, %p144
      %p147 = scmp.ne.s32.totalorder %s132, %s146
      %p148 = scmp.eq.s32.totalorder %s22, 0
      %p149 = por %p147, %p148
      %s151 = sadd.s32 %s150, 1
      %p154 = scmp.eq.s32.totalorder %s16, 1
      %p155 = scmp.ne.s32.totalorder %s150, %s152
      %p156 = scmp.eq.s32.totalorder %s16, 0
      %p157 = por %p155, %p156
      %p158 = scmp.ne.s32.totalorder %s150, %s152
      %p159 = scmp.eq.s32.totalorder %s21, 1
      %p160 = por %p158, %p159
      %p161 = scmp.ne.s32.totalorder %s152, %s153
      %p162 = scmp.eq.s32.totalorder %s21, 0
      %p163 = por %p161, %p162
      %p164 = scmp.ne.s32.totalorder %s152, %s153
      %p165 = scmp.eq.s32.totalorder %s22, 1
      %p166 = por %p164, %p165
      %p168 = scmp.ne.s32.totalorder %s153, %s167
      %p169 = scmp.eq.s32.totalorder %s22, 0
      %p170 = por %p168, %p169
      %s172 = sadd.s32 %s171, 1
      %p175 = scmp.eq.s32.totalorder %s16, 1
      %p176 = scmp.ne.s32.totalorder %s171, %s173
      %p177 = scmp.eq.s32.totalorder %s16, 0
      %p178 = por %p176, %p177
      %p179 = scmp.ne.s32.totalorder %s171, %s173
      %p180 = scmp.eq.s32.totalorder %s21, 1
      %p181 = por %p179, %p180
      %p182 = scmp.ne.s32.totalorder %s173, %s174
      %p183 = scmp.eq.s32.totalorder %s21, 0
      %p184 = por %p182, %p183
      %p185 = scmp.ne.s32.totalorder %s173, %s174
      %p186 = scmp.eq.s32.totalorder %s22, 1
      %p187 = por %p185, %p186
      %p189 = scmp.ne.s32.totalorder %s174, %s188
      %p190 = scmp.eq.s32.totalorder %s22, 0
      %p191 = por %p189, %p190
      %s192 = smul.u32 %s24, %s23
      %s193 = smul.u32 %s31, %s35
      %s194 = ssub.s32 %s192, %s193
      %p195 = scmp.eq.s32.totalorder %s194, 0
      %s197 = sadd.s32 %s196, 1
      %s198 = scalar_select %p195, %s196, %s197
      %p201 = pneg %p195
      %p202 = scmp.eq.s32.totalorder %s16, 1
      %p203 = por %p201, %p202
      %p204 = scmp.ne.s32.totalorder %s196, %s199
      %p205 = scmp.eq.s32.totalorder %s16, 0
      %p206 = por %p204, %p205
      %p207 = scmp.ne.s32.totalorder %s196, %s199
      %p208 = scmp.eq.s32.totalorder %s21, 1
      %p209 = por %p207, %p208
      %p210 = scmp.ne.s32.totalorder %s199, %s200
      %p211 = scmp.eq.s32.totalorder %s21, 0
      %p212 = por %p210, %p211
      %p213 = scmp.ne.s32.totalorder %s199, %s200
      %p214 = scmp.eq.s32.totalorder %s22, 1
      %p215 = por %p213, %p214
      %p217 = scmp.ne.s32.totalorder %s200, %s216
      %p218 = scmp.eq.s32.totalorder %s22, 0
      %p219 = por %p217, %p218
      %p220 = scmp.le.s32.totalorder 1, %s16
      %p221 = scmp.lt.s32.totalorder %s16, 3
      %p222 = pnand %p220, %p221
      %p223 = pneg %p222
      // Predicated region
      $region9: #{tpu_custom_call.1} parent=5 // pred_check
        _
      $region10: #{tpu_custom_call.1} parent=5 // pred_check_branch
        %225 = sbr.rel (%p222) target = $region12
      $region11: #{tpu_custom_call.1} parent=5 // pred_region
        %s226 = ssub.s32 %s16, 1
        // Predicated region
        $region13: #{tpu_custom_call.1} parent=11 // pred_check
          %p227 = pneg %p79
        $region14: #{tpu_custom_call.1} parent=11 // pred_check_branch
          %229 = sbr.rel (%p227) target = $region16
        $region15: #{tpu_custom_call.1} parent=11 // pred_region
          _
        $region16: #{tpu_custom_call.1} parent=11 // pred_fallthru
          _
        // Predicated region
        $region17: #{tpu_custom_call.1} parent=11 // pred_check
          %p230 = pneg %p100
        $region18: #{tpu_custom_call.1} parent=11 // pred_check_branch
          %232 = sbr.rel (%p230) target = $region20
        $region19: #{tpu_custom_call.1} parent=11 // pred_region
          _
        $region20: #{tpu_custom_call.1} parent=11 // pred_fallthru
          _
        // Predicated region
        $region21: #{tpu_custom_call.1} parent=11 // pred_check
          %p233 = pneg %p121
        $region22: #{tpu_custom_call.1} parent=11 // pred_check_branch
          %235 = sbr.rel (%p233) target = $region24
        $region23: #{tpu_custom_call.1} parent=11 // pred_region
          _
        $region24: #{tpu_custom_call.1} parent=11 // pred_fallthru
          _
        // Predicated region
        $region25: #{tpu_custom_call.1} parent=11 // pred_check
          %p236 = pneg %p142
        $region26: #{tpu_custom_call.1} parent=11 // pred_check_branch
          %238 = sbr.rel (%p236) target = $region28
        $region27: #{tpu_custom_call.1} parent=11 // pred_region
          _
        $region28: #{tpu_custom_call.1} parent=11 // pred_fallthru
          _
        // Predicated region
        $region29: #{tpu_custom_call.1} parent=11 // pred_check
          %p239 = pneg %p163
        $region30: #{tpu_custom_call.1} parent=11 // pred_check_branch
          %241 = sbr.rel (%p239) target = $region32
        $region31: #{tpu_custom_call.1} parent=11 // pred_region
          _
        $region32: #{tpu_custom_call.1} parent=11 // pred_fallthru
          _
        // Predicated region
        $region33: #{tpu_custom_call.1} parent=11 // pred_check
          %p242 = pneg %p184
        $region34: #{tpu_custom_call.1} parent=11 // pred_check_branch
          %244 = sbr.rel (%p242) target = $region36
        $region35: #{tpu_custom_call.1} parent=11 // pred_region
          _
        $region36: #{tpu_custom_call.1} parent=11 // pred_fallthru
          _
      $region12: #{tpu_custom_call.1} parent=5 // pred_fallthru
        _
      %p245 = scmp.lt.s32.totalorder %s16, 2
      // Predicated region
      $region37: #{tpu_custom_call.1} parent=5 // pred_check
        %p246 = pneg %p245
      $region38: #{tpu_custom_call.1} parent=5 // pred_check_branch
        %248 = sbr.rel (%p246) target = $region40
      $region39: #{tpu_custom_call.1} parent=5 // pred_region
        // Predicated region
        $region41: #{tpu_custom_call.1} parent=39 // pred_check
          %p249 = pneg %p52
        $region42: #{tpu_custom_call.1} parent=39 // pred_check_branch
          %251 = sbr.rel (%p249) target = $region44
        $region43: #{tpu_custom_call.1} parent=39 // pred_region
          %s252 = ssub.s32 1, %s23
          %s253 = smul.u32 %s24, %s252
          %s254 = smul.u32 25, %s253
          %p255 = scmp.lt.s32.totalorder %s254, 24
          %s256 = scalar_select %p255, %s254, 24
          %s257 = smul.addr %s256, 8
          %s258 = scalar_lea.vmem %s0, %s257
          %s259 = ssub.s32 1, %s23
          %s260 = smul.u32 %s24, %s259
          %s261 = smul.u32 25, %s260
        $region44: #{tpu_custom_call.1} parent=39 // pred_fallthru
          _
      $region40: #{tpu_custom_call.1} parent=5 // pred_fallthru
        _
      %p262 = scmp.le.s32.totalorder 1, %s16
      %p263 = scmp.lt.s32.totalorder %s16, 3
      %p264 = pnand %p262, %p263
      %p265 = pneg %p264
      // Predicated region
      $region45: #{tpu_custom_call.1} parent=5 // pred_check
        _
      $region46: #{tpu_custom_call.1} parent=5 // pred_check_branch
        %267 = sbr.rel (%p264) target = $region48
      $region47: #{tpu_custom_call.1} parent=5 // pred_region
        %s268 = ssub.s32 %s16, 1
        %s269 = ssub.s32 1, %s25
        %s270 = smul.u32 %s26, %s269
        %s271 = smul.u32 25, %s270
        %p272 = scmp.lt.s32.totalorder %s271, 24
        %s273 = scalar_select %p272, %s271, 24
        %s274 = smul.addr %s273, 8
        %s275 = scalar_lea.vmem %s0, %s274
        %p276 = pneg %p58
        %p277 = pneg %p55
        %p278 = pneg %p79
        %p279 = pneg %p76
        %p280 = pneg %p100
        %p281 = pneg %p97
        %p282 = pneg %p121
        %p283 = pneg %p118
        %p284 = pneg %p142
        %p285 = pneg %p139
        %p286 = pneg %p163
        %p287 = pneg %p160
        %p288 = pneg %p184
        %p289 = pneg %p181
        %p290 = pneg %p212
        %p291 = pneg %p209
        %s292 = sand.u32 %s199, 1
        %s293 = scalar_lea.sflag [#allocation8], %s292
        %s294 = sand.u32 %s199, 1
        %s295 = smul.addr %s294, 200
        %s296 = scalar_lea.vmem [#allocation7], %s295
        %s297 = ssub.s32 1, %s25
        %s298 = smul.u32 %s26, %s297
        %s299 = smul.u32 25, %s298
        %p300 = scmp.lt.s32.totalorder %s299, 24
        %s301 = scalar_select %p300, %s299, 24
        %s302 = smul.addr %s301, 8
        %s303 = scalar_lea.vmem %s0, %s302
        %s304 = ssub.s32 1, %s25
        %s305 = smul.u32 %s26, %s304
        %s306 = smul.u32 25, %s305
        %s307 = smul.u32 %s26, %s25
        %s308 = smul.u32 25, %s307
        %p310 = scmp.eq.s32.totalorder %s25, 0
        // Predicated region
        $region49: #{tpu_custom_call.1} parent=47 // pred_check
          %p311 = pneg %p310
        $region50: #{tpu_custom_call.1} parent=47 // pred_check_branch
          %313 = sbr.rel (%p311) target = $region52
        $region51: #{tpu_custom_call.1} parent=47 // pred_region
          %v314 = vld [vmem:[%s303] sm:$0xff]
          %v315 = vld [vmem:[%s303 + $0x8] sm:$0xff]
          %v316 = vld [vmem:[%s303 + $0x10] sm:$0xff]
          %v317 = vld [vmem:[%s303 + $0x18] sm:$0xff]
          %v318 = vld [vmem:[%s303 + $0x20] sm:$0xff]
          %v319 = vld [vmem:[%s303 + $0x28] sm:$0xff]
          %v320 = vld [vmem:[%s303 + $0x30] sm:$0xff]
          %v321 = vld [vmem:[%s303 + $0x38] sm:$0xff]
          %v322 = vld [vmem:[%s303 + $0x40] sm:$0xff]
          %v323 = vld [vmem:[%s303 + $0x48] sm:$0xff]
          %v324 = vld [vmem:[%s303 + $0x50] sm:$0xff]
          %v325 = vld [vmem:[%s303 + $0x58] sm:$0xff]
          %v326 = vld [vmem:[%s303 + $0x60] sm:$0xff]
          %v327 = vld [vmem:[%s303 + $0x68] sm:$0xff]
          %v328 = vld [vmem:[%s303 + $0x70] sm:$0xff]
          %v329 = vld [vmem:[%s303 + $0x78] sm:$0xff]
          %v330 = vld [vmem:[%s303 + $0x80] sm:$0xff]
          %v331 = vld [vmem:[%s303 + $0x88] sm:$0xff]
          %v332 = vld [vmem:[%s303 + $0x90] sm:$0xff]
          %v333 = vld [vmem:[%s303 + $0x98] sm:$0xff]
          %v334 = vld [vmem:[%s303 + $0xa0] sm:$0xff]
          %v335 = vld [vmem:[%s303 + $0xa8] sm:$0xff]
          %v336 = vld [vmem:[%s303 + $0xb0] sm:$0xff]
          %v337 = vld [vmem:[%s303 + $0xb8] sm:$0xff]
          %v338 = vld [vmem:[%s303 + $0xc0] sm:$0xff]
          %v339 = vpack.c.bf16 %v315, %v314
          %v340 = vpack.c.bf16 %v317, %v316
          %v341 = vpack.c.bf16 %v319, %v318
          %v342 = vpack.c.bf16 %v321, %v320
          %v343 = vpack.c.bf16 %v323, %v322
          %v344 = vpack.c.bf16 %v325, %v324
          %v345 = vpack.c.bf16 %v327, %v326
          %v346 = vpack.c.bf16 %v329, %v328
          %v347 = vpack.c.bf16 %v331, %v330
          %v348 = vpack.c.bf16 %v333, %v332
          %v349 = vpack.c.bf16 %v335, %v334
          %v350 = vpack.c.bf16 %v337, %v336
          %v351 = vpack.c.bf16 %v338, %v338
          %v352 = vld [vmem:[%s1] sm:$0xf]
          %v353 = vld [vmem:[%s1 + $0x4] sm:$0xf]
          %v354 = vld [vmem:[%s1 + $0x8] sm:$0xf]
          %v355 = vld [vmem:[%s1 + $0xc] sm:$0xf]
          %v356 = vld [vmem:[%s1 + $0x10] sm:$0xf]
          %v357 = vld [vmem:[%s1 + $0x14] sm:$0xf]
          %v358 = vld [vmem:[%s2] sm:$0x1]
          %v360 = vlaneseq
          %v361 = vshrl.u32 %v360, 7
          %v362 = vsub.s32 0, %v361
          %v363 = vrot.slane %v358, %v362
          %v371 = vunpack.c.l.b16 %v352
          %v372 = vunpack.c.l.b16 %v353
          %v373 = vunpack.c.l.b16 %v354
          %v374 = vunpack.c.l.b16 %v355
          %v375 = vunpack.c.l.b16 %v356
          %v376 = vunpack.c.l.b16 %v357
          %v377 = vpack.c.b16 %v372, %v371
          %v378 = vpack.c.b16 %v374, %v373
          %v379 = vpack.c.b16 %v376, %v375
          %vm383 = vcmask 392192
          %v385 = vsel %vm383, %v339, 0
          %v388 = vsel %vm383, %v340, 0
          %v391 = vsel %vm383, %v341, 0
          %v394 = vsel %vm383, %v342, 0
          %v397 = vsel %vm383, %v343, 0
          %v400 = vsel %vm383, %v344, 0
          %v403 = vsel %vm383, %v345, 0
          %v406 = vsel %vm383, %v346, 0
          %v409 = vsel %vm383, %v347, 0
          %v412 = vsel %vm383, %v348, 0
          %v415 = vsel %vm383, %v349, 0
          %v418 = vsel %vm383, %v350, 0
          %v421 = vsel %vm383, %v351, 0
          %423 = vmatprep.subr.bf16.mxu0 0
          %424 = vmatpush1.bf16.msra.mxu0 %v377
          %425 = vmatprep.subr.bf16.mxu0 0
          %426 = vmatpush1.bf16.msra.mxu0 %v378
          %427 = vmatprep.subr.bf16.mxu0 0
          %428 = vmatpush1.bf16.msra.mxu0 %v379
          %429 = vmatprep.subr.bf16.mxu0 0
          %430 = vmatpush1.bf16.msra.mxu0 0
          %431 = vmatprep.subr.bf16.mxu0 0
          %432 = vmatpush1.bf16.msra.mxu0 0
          %433 = vmatprep.subr.bf16.mxu0 0
          %434 = vmatpush1.bf16.msra.mxu0 0
          %435 = vmatprep.subr.bf16.mxu0 0
          %436 = vmatpush1.bf16.msra.mxu0 0
          %437 = vmatprep.subr.bf16.mxu0 0
          %438 = vmatpush1.bf16.msra.mxu0 0
          %439 = vmatprep.subr.bf16.mxu0 0
          %440 = vmatpush1.bf16.msra.mxu0 0
          %441 = vmatprep.subr.bf16.mxu0 0
          %442 = vmatpush1.bf16.msra.mxu0 0
          %443 = vmatprep.subr.bf16.mxu0 0
          %444 = vmatpush1.bf16.msra.mxu0 0
          %445 = vmatprep.subr.bf16.mxu0 0
          %446 = vmatpush1.bf16.msra.mxu0 0
          %447 = vmatprep.subr.bf16.mxu0 0
          %448 = vmatpush1.bf16.msra.mxu0 0
          %449 = vmatprep.subr.bf16.mxu0 0
          %450 = vmatpush1.bf16.msra.mxu0 0
          %451 = vmatprep.subr.bf16.mxu0 0
          %452 = vmatpush1.bf16.msra.mxu0 0
          %453 = vmatprep.subr.bf16.mxu0 0
          %454 = vmatpush1.bf16.msra.mxu0 0
          %455 = vmatprep.mubr.bf16.mxu0 0
          %456 = vmatmul.mubr.bf16.gmra.mrb[0].mxu0 %v385
          %v457 = vpop.f32.mrb[0].mxu0
          %v458 = vadd.f32 %v363, %v457
          %v459 = vpop.f32.mrb[0].mxu0
          %v460 = vpop.f32.mrb[0].mxu0
          %v461 = vadd.f32 %v363, %v460
          %v462 = vpop.f32.mrb[0].mxu0
          %463 = vmatprep.mubr.bf16.mxu0 0
          %464 = vmatmul.mubr.bf16.gmra.mrb[0].mxu0 %v388
          %v465 = vpop.f32.mrb[0].mxu0
          %v466 = vadd.f32 %v363, %v465
          %v467 = vpop.f32.mrb[0].mxu0
          %v468 = vpop.f32.mrb[0].mxu0
          %v469 = vadd.f32 %v363, %v468
          %v470 = vpop.f32.mrb[0].mxu0
          %471 = vmatprep.mubr.bf16.mxu0 0
          %472 = vmatmul.mubr.bf16.gmra.mrb[0].mxu0 %v391
          %v473 = vpop.f32.mrb[0].mxu0
          %v474 = vadd.f32 %v363, %v473
          %v475 = vpop.f32.mrb[0].mxu0
          %v476 = vpop.f32.mrb[0].mxu0
          %v477 = vadd.f32 %v363, %v476
          %v478 = vpop.f32.mrb[0].mxu0
          %479 = vmatprep.mubr.bf16.mxu0 0
          %480 = vmatmul.mubr.bf16.gmra.mrb[0].mxu0 %v394
          %v481 = vpop.f32.mrb[0].mxu0
          %v482 = vadd.f32 %v363, %v481
          %v483 = vpop.f32.mrb[0].mxu0
          %v484 = vpop.f32.mrb[0].mxu0
          %v485 = vadd.f32 %v363, %v484
          %v486 = vpop.f32.mrb[0].mxu0
          %487 = vmatprep.mubr.bf16.mxu0 0
          %488 = vmatmul.mubr.bf16.gmra.mrb[0].mxu0 %v397
          %v489 = vpop.f32.mrb[0].mxu0
          %v490 = vadd.f32 %v363, %v489
          %v491 = vpop.f32.mrb[0].mxu0
          %v492 = vpop.f32.mrb[0].mxu0
          %v493 = vadd.f32 %v363, %v492
          %v494 = vpop.f32.mrb[0].mxu0
          %495 = vmatprep.mubr.bf16.mxu0 0
          %496 = vmatmul.mubr.bf16.gmra.mrb[0].mxu0 %v400
          %v497 = vpop.f32.mrb[0].mxu0
          %v498 = vadd.f32 %v363, %v497
          %v499 = vpop.f32.mrb[0].mxu0
          %v500 = vpop.f32.mrb[0].mxu0
          %v501 = vadd.f32 %v363, %v500
          %v502 = vpop.f32.mrb[0].mxu0
          %503 = vmatprep.mubr.bf16.mxu0 0
          %504 = vmatmul.mubr.bf16.gmra.mrb[0].mxu0 %v403
          %v505 = vpop.f32.mrb[0].mxu0
          %v506 = vadd.f32 %v363, %v505
          %v507 = vpop.f32.mrb[0].mxu0
          %v508 = vpop.f32.mrb[0].mxu0
          %v509 = vadd.f32 %v363, %v508
          %v510 = vpop.f32.mrb[0].mxu0
          %511 = vmatprep.mubr.bf16.mxu0 0
          %512 = vmatmul.mubr.bf16.gmra.mrb[0].mxu0 %v406
          %v513 = vpop.f32.mrb[0].mxu0
          %v514 = vadd.f32 %v363, %v513
          %v515 = vpop.f32.mrb[0].mxu0
          %v516 = vpop.f32.mrb[0].mxu0
          %v517 = vadd.f32 %v363, %v516
          %v518 = vpop.f32.mrb[0].mxu0
          %519 = vmatprep.mubr.bf16.mxu0 0
          %520 = vmatmul.mubr.bf16.gmra.mrb[0].mxu0 %v409
          %v521 = vpop.f32.mrb[0].mxu0
          %v522 = vadd.f32 %v363, %v521
          %v523 = vpop.f32.mrb[0].mxu0
          %v524 = vpop.f32.mrb[0].mxu0
          %v525 = vadd.f32 %v363, %v524
          %v526 = vpop.f32.mrb[0].mxu0
          %527 = vmatprep.mubr.bf16.mxu0 0
          %528 = vmatmul.mubr.bf16.gmra.mrb[0].mxu0 %v412
          %v529 = vpop.f32.mrb[0].mxu0
          %v530 = vadd.f32 %v363, %v529
          %v531 = vpop.f32.mrb[0].mxu0
          %v532 = vpop.f32.mrb[0].mxu0
          %v533 = vadd.f32 %v363, %v532
          %v534 = vpop.f32.mrb[0].mxu0
          %535 = vmatprep.mubr.bf16.mxu0 0
          %536 = vmatmul.mubr.bf16.gmra.mrb[0].mxu0 %v415
          %v537 = vpop.f32.mrb[0].mxu0
          %v538 = vadd.f32 %v363, %v537
          %v539 = vpop.f32.mrb[0].mxu0
          %v540 = vpop.f32.mrb[0].mxu0
          %v541 = vadd.f32 %v363, %v540
          %v542 = vpop.f32.mrb[0].mxu0
          %543 = vmatprep.mubr.bf16.mxu0 0
          %544 = vmatmul.mubr.bf16.gmra.mrb[0].mxu0 %v418
          %v545 = vpop.f32.mrb[0].mxu0
          %v546 = vadd.f32 %v363, %v545
          %v547 = vpop.f32.mrb[0].mxu0
          %v548 = vpop.f32.mrb[0].mxu0
          %v549 = vadd.f32 %v363, %v548
          %v550 = vpop.f32.mrb[0].mxu0
          %551 = vmatprep.mubr.bf16.mxu0 0
          %552 = vmatmul.mubr.bf16.gmra.mrb[0].mxu0 %v421
          %v553 = vpop.f32.mrb[0].mxu0
          %v554 = vadd.f32 %v363, %v553
          %v555 = vpop.f32.mrb[0].mxu0
          %v556 = vpop.f32.mrb[0].mxu0
          %v557 = vpop.f32.mrb[0].mxu0
          %558 = vdwg.mxu0
          %v559 = vmax.f32 %v458, 0.0
          %v560 = vmax.f32 %v461, 0.0
          %v561 = vmax.f32 %v466, 0.0
          %v562 = vmax.f32 %v469, 0.0
          %v563 = vmax.f32 %v474, 0.0
          %v564 = vmax.f32 %v477, 0.0
          %v565 = vmax.f32 %v482, 0.0
          %v566 = vmax.f32 %v485, 0.0
          %v567 = vmax.f32 %v490, 0.0
          %v568 = vmax.f32 %v493, 0.0
          %v569 = vmax.f32 %v498, 0.0
          %v570 = vmax.f32 %v501, 0.0
          %v571 = vmax.f32 %v506, 0.0
          %v572 = vmax.f32 %v509, 0.0
          %v573 = vmax.f32 %v514, 0.0
          %v574 = vmax.f32 %v517, 0.0
          %v575 = vmax.f32 %v522, 0.0
          %v576 = vmax.f32 %v525, 0.0
          %v577 = vmax.f32 %v530, 0.0
          %v578 = vmax.f32 %v533, 0.0
          %v579 = vmax.f32 %v538, 0.0
          %v580 = vmax.f32 %v541, 0.0
          %v581 = vmax.f32 %v546, 0.0
          %v582 = vmax.f32 %v549, 0.0
          %v583 = vmax.f32 %v554, 0.0
          %s584 = smul.u32 %s26, 200
          %s585 = scalar_lea.vmem [#allocation6], %s584
          %586 = vst [vmem:[%s585] sm:$0xff] %v559
          %587 = vst [vmem:[%s585 + $0x8] sm:$0xff] %v560
          %588 = vst [vmem:[%s585 + $0x10] sm:$0xff] %v561
          %589 = vst [vmem:[%s585 + $0x18] sm:$0xff] %v562
          %590 = vst [vmem:[%s585 + $0x20] sm:$0xff] %v563
          %591 = vst [vmem:[%s585 + $0x28] sm:$0xff] %v564
          %592 = vst [vmem:[%s585 + $0x30] sm:$0xff] %v565
          %593 = vst [vmem:[%s585 + $0x38] sm:$0xff] %v566
          %594 = vst [vmem:[%s585 + $0x40] sm:$0xff] %v567
          %595 = vst [vmem:[%s585 + $0x48] sm:$0xff] %v568
          %596 = vst [vmem:[%s585 + $0x50] sm:$0xff] %v569
          %597 = vst [vmem:[%s585 + $0x58] sm:$0xff] %v570
          %598 = vst [vmem:[%s585 + $0x60] sm:$0xff] %v571
          %599 = vst [vmem:[%s585 + $0x68] sm:$0xff] %v572
          %600 = vst [vmem:[%s585 + $0x70] sm:$0xff] %v573
          %601 = vst [vmem:[%s585 + $0x78] sm:$0xff] %v574
          %602 = vst [vmem:[%s585 + $0x80] sm:$0xff] %v575
          %603 = vst [vmem:[%s585 + $0x88] sm:$0xff] %v576
          %604 = vst [vmem:[%s585 + $0x90] sm:$0xff] %v577
          %605 = vst [vmem:[%s585 + $0x98] sm:$0xff] %v578
          %606 = vst [vmem:[%s585 + $0xa0] sm:$0xff] %v579
          %607 = vst [vmem:[%s585 + $0xa8] sm:$0xff] %v580
          %608 = vst [vmem:[%s585 + $0xb0] sm:$0xff] %v581
          %609 = vst [vmem:[%s585 + $0xb8] sm:$0xff] %v582
          %610 = vst [vmem:[%s585 + $0xc0] sm:$0xff] %v583
          %p611 = scmp.eq.s32.totalorder %s26, 0
          // Predicated region
          $region53: #{tpu_custom_call.1} parent=51 // pred_check
            %p612 = pneg %p611
          $region54: #{tpu_custom_call.1} parent=51 // pred_check_branch
            %614 = sbr.rel (%p612) target = $region56
          $region55: #{tpu_custom_call.1} parent=51 // pred_region
            %615 = vst [vmem:[#allocation2] sm:$0xff] 0.0
            %616 = vst [vmem:[#allocation3] sm:$0xff] 0.0
          $region56: #{tpu_custom_call.1} parent=51 // pred_fallthru
            _
          %v617 = vlaneseq
          %v618 = vshrl.u32 %v617, 7
          %v619 = vadd.s32 %v618, 8
          %v620 = vadd.s32 %v618, 16
          %v621 = vadd.s32 %v618, 24
          %v622 = vadd.s32 %v618, 32
          %v623 = vadd.s32 %v618, 40
          %v624 = vadd.s32 %v618, 48
          %v625 = vadd.s32 %v618, 56
          %v626 = vadd.s32 %v618, 64
          %v627 = vadd.s32 %v618, 72
          %v628 = vadd.s32 %v618, 80
          %v629 = vadd.s32 %v618, 88
          %v630 = vadd.s32 %v618, 96
          %v631 = vadd.s32 %v618, 104
          %v632 = vadd.s32 %v618, 112
          %v633 = vadd.s32 %v618, 120
          %v634 = vadd.s32 %v618, 128
          %v635 = vadd.s32 %v618, 136
          %v636 = vadd.s32 %v618, 144
          %v637 = vadd.s32 %v618, 152
          %v638 = vadd.s32 %v618, 160
          %v639 = vadd.s32 %v618, 168
          %v640 = vadd.s32 %v618, 176
          %v641 = vadd.s32 %v618, 184
          %v642 = vadd.s32 %v618, 192
          %v643 = vstv %s584
          %v644 = vadd.s32 %v643, %v618
          %v645 = vadd.s32 %v643, %v619
          %v646 = vadd.s32 %v643, %v620
          %v647 = vadd.s32 %v643, %v621
          %v648 = vadd.s32 %v643, %v622
          %v649 = vadd.s32 %v643, %v623
          %v650 = vadd.s32 %v643, %v624
          %v651 = vadd.s32 %v643, %v625
          %v652 = vadd.s32 %v643, %v626
          %v653 = vadd.s32 %v643, %v627
          %v654 = vadd.s32 %v643, %v628
          %v655 = vadd.s32 %v643, %v629
          %v656 = vadd.s32 %v643, %v630
          %v657 = vadd.s32 %v643, %v631
          %v658 = vadd.s32 %v643, %v632
          %v659 = vadd.s32 %v643, %v633
          %v660 = vadd.s32 %v643, %v634
          %v661 = vadd.s32 %v643, %v635
          %v662 = vadd.s32 %v643, %v636
          %v663 = vadd.s32 %v643, %v637
          %v664 = vadd.s32 %v643, %v638
          %v665 = vadd.s32 %v643, %v639
          %v666 = vadd.s32 %v643, %v640
          %v667 = vadd.s32 %v643, %v641
          %v668 = vadd.s32 %v643, %v642
          %vm669 = vcmp.lt.s32.totalorder %v644, 200
          %vm670 = vcmp.lt.s32.totalorder %v645, 200
          %vm671 = vcmp.lt.s32.totalorder %v646, 200
          %vm672 = vcmp.lt.s32.totalorder %v647, 200
          %vm673 = vcmp.lt.s32.totalorder %v648, 200
          %vm674 = vcmp.lt.s32.totalorder %v649, 200
          %vm675 = vcmp.lt.s32.totalorder %v650, 200
          %vm676 = vcmp.lt.s32.totalorder %v651, 200
          %vm677 = vcmp.lt.s32.totalorder %v652, 200
          %vm678 = vcmp.lt.s32.totalorder %v653, 200
          %vm679 = vcmp.lt.s32.totalorder %v654, 200
          %vm680 = vcmp.lt.s32.totalorder %v655, 200
          %vm681 = vcmp.lt.s32.totalorder %v656, 200
          %vm682 = vcmp.lt.s32.totalorder %v657, 200
          %vm683 = vcmp.lt.s32.totalorder %v658, 200
          %vm684 = vcmp.lt.s32.totalorder %v659, 200
          %vm685 = vcmp.lt.s32.totalorder %v660, 200
          %vm686 = vcmp.lt.s32.totalorder %v661, 200
          %vm687 = vcmp.lt.s32.totalorder %v662, 200
          %vm688 = vcmp.lt.s32.totalorder %v663, 200
          %vm689 = vcmp.lt.s32.totalorder %v664, 200
          %vm690 = vcmp.lt.s32.totalorder %v665, 200
          %vm691 = vcmp.lt.s32.totalorder %v666, 200
          %vm692 = vcmp.lt.s32.totalorder %v667, 200
          %vm693 = vcmp.lt.s32.totalorder %v668, 200
          %v694 = vsel %vm669, %v559, 0.0
          %v695 = vsel %vm670, %v560, 0.0
          %v696 = vsel %vm671, %v561, 0.0
          %v697 = vsel %vm672, %v562, 0.0
          %v698 = vsel %vm673, %v563, 0.0
          %v699 = vsel %vm674, %v564, 0.0
          %v700 = vsel %vm675, %v565, 0.0
          %v701 = vsel %vm676, %v566, 0.0
          %v702 = vsel %vm677, %v567, 0.0
          %v703 = vsel %vm678, %v568, 0.0
          %v704 = vsel %vm679, %v569, 0.0
          %v705 = vsel %vm680, %v570, 0.0
          %v706 = vsel %vm681, %v571, 0.0
          %v707 = vsel %vm682, %v572, 0.0
          %v708 = vsel %vm683, %v573, 0.0
          %v709 = vsel %vm684, %v574, 0.0
          %v710 = vsel %vm685, %v575, 0.0
          %v711 = vsel %vm686, %v576, 0.0
          %v712 = vsel %vm687, %v577, 0.0
          %v713 = vsel %vm688, %v578, 0.0
          %v714 = vsel %vm689, %v579, 0.0
          %v715 = vsel %vm690, %v580, 0.0
          %v716 = vsel %vm691, %v581, 0.0
          %v717 = vsel %vm692, %v582, 0.0
          %v718 = vsel %vm693, %v583, 0.0
          %v719 = vld [vmem:[#allocation2] sm:$0xff]
          %v720 = vadd.f32 %v694, %v695
          %v721 = vadd.f32 %v720, %v696
          %v722 = vadd.f32 %v721, %v697
          %v723 = vadd.f32 %v722, %v698
          %v724 = vadd.f32 %v723, %v699
          %v725 = vadd.f32 %v724, %v700
          %v726 = vadd.f32 %v725, %v701
          %v727 = vadd.f32 %v726, %v702
          %v728 = vadd.f32 %v727, %v703
          %v729 = vadd.f32 %v728, %v704
          %v730 = vadd.f32 %v729, %v705
          %v731 = vadd.f32 %v730, %v706
          %v732 = vadd.f32 %v731, %v707
          %v733 = vadd.f32 %v732, %v708
          %v734 = vadd.f32 %v733, %v709
          %v735 = vadd.f32 %v734, %v710
          %v736 = vadd.f32 %v735, %v711
          %v737 = vadd.f32 %v736, %v712
          %v738 = vadd.f32 %v737, %v713
          %v739 = vadd.f32 %v738, %v714
          %v740 = vadd.f32 %v739, %v715
          %v741 = vadd.f32 %v740, %v716
          %v742 = vadd.f32 %v741, %v717
          %v743 = vadd.f32 %v742, %v718
          %v744 = vadd.f32 %v719, %v743
          %745 = vst [vmem:[#allocation2] sm:$0xff] %v744
          %v746 = vld [vmem:[#allocation3] sm:$0xff]
          %v747 = vmul.f32 %v694, %v694
          %v748 = vmul.f32 %v695, %v695
          %v749 = vmul.f32 %v696, %v696
          %v750 = vmul.f32 %v697, %v697
          %v751 = vmul.f32 %v698, %v698
          %v752 = vmul.f32 %v699, %v699
          %v753 = vmul.f32 %v700, %v700
          %v754 = vmul.f32 %v701, %v701
          %v755 = vmul.f32 %v702, %v702
          %v756 = vmul.f32 %v703, %v703
          %v757 = vmul.f32 %v704, %v704
          %v758 = vmul.f32 %v705, %v705
          %v759 = vmul.f32 %v706, %v706
          %v760 = vmul.f32 %v707, %v707
          %v761 = vmul.f32 %v708, %v708
          %v762 = vmul.f32 %v709, %v709
          %v763 = vmul.f32 %v710, %v710
          %v764 = vmul.f32 %v711, %v711
          %v765 = vmul.f32 %v712, %v712
          %v766 = vmul.f32 %v713, %v713
          %v767 = vmul.f32 %v714, %v714
          %v768 = vmul.f32 %v715, %v715
          %v769 = vmul.f32 %v716, %v716
          %v770 = vmul.f32 %v717, %v717
          %v771 = vmul.f32 %v718, %v718
          %v772 = vadd.f32 %v747, %v748
          %v773 = vadd.f32 %v772, %v749
          %v774 = vadd.f32 %v773, %v750
          %v775 = vadd.f32 %v774, %v751
          %v776 = vadd.f32 %v775, %v752
          %v777 = vadd.f32 %v776, %v753
          %v778 = vadd.f32 %v777, %v754
          %v779 = vadd.f32 %v778, %v755
          %v780 = vadd.f32 %v779, %v756
          %v781 = vadd.f32 %v780, %v757
          %v782 = vadd.f32 %v781, %v758
          %v783 = vadd.f32 %v782, %v759
          %v784 = vadd.f32 %v783, %v760
          %v785 = vadd.f32 %v784, %v761
          %v786 = vadd.f32 %v785, %v762
          %v787 = vadd.f32 %v786, %v763
          %v788 = vadd.f32 %v787, %v764
          %v789 = vadd.f32 %v788, %v765
          %v790 = vadd.f32 %v789, %v766
          %v791 = vadd.f32 %v790, %v767
          %v792 = vadd.f32 %v791, %v768
          %v793 = vadd.f32 %v792, %v769
          %v794 = vadd.f32 %v793, %v770
          %v795 = vadd.f32 %v794, %v771
          %v796 = vadd.f32 %v746, %v795
          %797 = vst [vmem:[#allocation3] sm:$0xff] %v796
        $region52: #{tpu_custom_call.1} parent=47 // pred_fallthru
          _
        %p798 = scmp.eq.s32.totalorder %s25, 1
        // Predicated region
        $region57: #{tpu_custom_call.1} parent=47 // pred_check
          %p799 = pneg %p798
        $region58: #{tpu_custom_call.1} parent=47 // pred_check_branch
          %801 = sbr.rel (%p799) target = $region60
        $region59: #{tpu_custom_call.1} parent=47 // pred_region
          %p802 = scmp.eq.s32.totalorder %s26, 0
          // Predicated region
          $region61: #{tpu_custom_call.1} parent=59 // pred_check
            %p803 = pneg %p802
          $region62: #{tpu_custom_call.1} parent=59 // pred_check_branch
            %805 = sbr.rel (%p803) target = $region64
          $region63: #{tpu_custom_call.1} parent=59 // pred_region
            %v806 = vld [vmem:[#allocation2] sm:$0xff]
            %v807 = vrot.slane %v806, 4
            %v808 = vadd.f32 %v806, %v807
            %v809 = vrot.slane %v808, 2
            %v810 = vadd.f32 %v808, %v809
            %v811 = vrot.slane %v810, 1
            %v812 = vadd.f32 %v810, %v811
            %v813 = vmul.f32 %v812, 0.005
            %v814 = vld [vmem:[#allocation3] sm:$0xff]
            %v815 = vrot.slane %v814, 4
            %v816 = vadd.f32 %v814, %v815
            %v817 = vrot.slane %v816, 2
            %v818 = vadd.f32 %v816, %v817
            %v819 = vrot.slane %v818, 1
            %v820 = vadd.f32 %v818, %v819
            %v821 = vmul.f32 %v820, 0.005
            %v822 = vmul.f32 %v813, %v813
            %v823 = vsub.f32 %v821, %v822
            %v824 = vmax.f32 %v823, 0.0
            %v825 = vld [vmem:[%s3] sm:$0x1]
            %v826 = vadd.f32 %v824, 1e-05
            %v827 = vrsqrt.pop %v826
            %v828 = vmul.f32 %v825, %v827
            %829 = vst [vmem:[#allocation4] sm:$0x1] %v828
            %v830 = vld [vmem:[%s4] sm:$0x1]
            %v831 = vmul.f32 %v813, %v828
            %v832 = vsub.f32 %v830, %v831
            %833 = vst [vmem:[#allocation5] sm:$0x1] %v832
          $region64: #{tpu_custom_call.1} parent=59 // pred_fallthru
            _
          %s834 = smul.u32 %s26, 200
          %s835 = scalar_lea.vmem [#allocation6], %s834
          %v836 = vld [vmem:[%s835] sm:$0xff]
          %v837 = vld [vmem:[%s835 + $0x8] sm:$0xff]
          %v838 = vld [vmem:[%s835 + $0x10] sm:$0xff]
          %v839 = vld [vmem:[%s835 + $0x18] sm:$0xff]
          %v840 = vld [vmem:[%s835 + $0x20] sm:$0xff]
          %v841 = vld [vmem:[%s835 + $0x28] sm:$0xff]
          %v842 = vld [vmem:[%s835 + $0x30] sm:$0xff]
          %v843 = vld [vmem:[%s835 + $0x38] sm:$0xff]
          %v844 = vld [vmem:[%s835 + $0x40] sm:$0xff]
          %v845 = vld [vmem:[%s835 + $0x48] sm:$0xff]
          %v846 = vld [vmem:[%s835 + $0x50] sm:$0xff]
          %v847 = vld [vmem:[%s835 + $0x58] sm:$0xff]
          %v848 = vld [vmem:[%s835 + $0x60] sm:$0xff]
          %v849 = vld [vmem:[%s835 + $0x68] sm:$0xff]
          %v850 = vld [vmem:[%s835 + $0x70] sm:$0xff]
          %v851 = vld [vmem:[%s835 + $0x78] sm:$0xff]
          %v852 = vld [vmem:[%s835 + $0x80] sm:$0xff]
          %v853 = vld [vmem:[%s835 + $0x88] sm:$0xff]
          %v854 = vld [vmem:[%s835 + $0x90] sm:$0xff]
          %v855 = vld [vmem:[%s835 + $0x98] sm:$0xff]
          %v856 = vld [vmem:[%s835 + $0xa0] sm:$0xff]
          %v857 = vld [vmem:[%s835 + $0xa8] sm:$0xff]
          %v858 = vld [vmem:[%s835 + $0xb0] sm:$0xff]
          %v859 = vld [vmem:[%s835 + $0xb8] sm:$0xff]
          %v860 = vld [vmem:[%s835 + $0xc0] sm:$0xff]
          %v861 = vld [vmem:[#allocation4] sm:$0x1]
          %v863 = vlaneseq
          %v864 = vshrl.u32 %v863, 7
          %v865 = vsub.s32 0, %v864
          %v866 = vrot.slane %v861, %v865
          %v868 = vmul.f32 %v836, %v866
          %v869 = vmul.f32 %v837, %v866
          %v870 = vmul.f32 %v838, %v866
          %v871 = vmul.f32 %v839, %v866
          %v872 = vmul.f32 %v840, %v866
          %v873 = vmul.f32 %v841, %v866
          %v874 = vmul.f32 %v842, %v866
          %v875 = vmul.f32 %v843, %v866
          %v876 = vmul.f32 %v844, %v866
          %v877 = vmul.f32 %v845, %v866
          %v878 = vmul.f32 %v846, %v866
          %v879 = vmul.f32 %v847, %v866
          %v880 = vmul.f32 %v848, %v866
          %v881 = vmul.f32 %v849, %v866
          %v882 = vmul.f32 %v850, %v866
          %v883 = vmul.f32 %v851, %v866
          %v884 = vmul.f32 %v852, %v866
          %v885 = vmul.f32 %v853, %v866
          %v886 = vmul.f32 %v854, %v866
          %v887 = vmul.f32 %v855, %v866
          %v888 = vmul.f32 %v856, %v866
          %v889 = vmul.f32 %v857, %v866
          %v890 = vmul.f32 %v858, %v866
          %v891 = vmul.f32 %v859, %v866
          %v892 = vmul.f32 %v860, %v866
          %v893 = vld [vmem:[#allocation5] sm:$0x1]
          %v895 = vlaneseq
          %v896 = vshrl.u32 %v895, 7
          %v897 = vsub.s32 0, %v896
          %v898 = vrot.slane %v893, %v897
          %v900 = vadd.f32 %v868, %v898
          %v901 = vadd.f32 %v869, %v898
          %v902 = vadd.f32 %v870, %v898
          %v903 = vadd.f32 %v871, %v898
          %v904 = vadd.f32 %v872, %v898
          %v905 = vadd.f32 %v873, %v898
          %v906 = vadd.f32 %v874, %v898
          %v907 = vadd.f32 %v875, %v898
          %v908 = vadd.f32 %v876, %v898
          %v909 = vadd.f32 %v877, %v898
          %v910 = vadd.f32 %v878, %v898
          %v911 = vadd.f32 %v879, %v898
          %v912 = vadd.f32 %v880, %v898
          %v913 = vadd.f32 %v881, %v898
          %v914 = vadd.f32 %v882, %v898
          %v915 = vadd.f32 %v883, %v898
          %v916 = vadd.f32 %v884, %v898
          %v917 = vadd.f32 %v885, %v898
          %v918 = vadd.f32 %v886, %v898
          %v919 = vadd.f32 %v887, %v898
          %v920 = vadd.f32 %v888, %v898
          %v921 = vadd.f32 %v889, %v898
          %v922 = vadd.f32 %v890, %v898
          %v923 = vadd.f32 %v891, %v898
          %v924 = vadd.f32 %v892, %v898
          %v925 = vpack.c.bf16 %v901, %v900
          %v926 = vpack.c.bf16 %v903, %v902
          %v927 = vpack.c.bf16 %v905, %v904
          %v928 = vpack.c.bf16 %v907, %v906
          %v929 = vpack.c.bf16 %v909, %v908
          %v930 = vpack.c.bf16 %v911, %v910
          %v931 = vpack.c.bf16 %v913, %v912
          %v932 = vpack.c.bf16 %v915, %v914
          %v933 = vpack.c.bf16 %v917, %v916
          %v934 = vpack.c.bf16 %v919, %v918
          %v935 = vpack.c.bf16 %v921, %v920
          %v936 = vpack.c.bf16 %v923, %v922
          %v937 = vpack.c.bf16 %v924, %v924
          %v938 = vld [vmem:[%s5] sm:$0xf]
          %v939 = vld [vmem:[%s5 + $0x4] sm:$0xf]
          %v940 = vld [vmem:[%s5 + $0x8] sm:$0xf]
          %v941 = vld [vmem:[%s5 + $0xc] sm:$0xf]
          %v942 = vld [vmem:[%s5 + $0x10] sm:$0xf]
          %v943 = vld [vmem:[%s5 + $0x14] sm:$0xf]
          %v944 = vld [vmem:[%s5 + $0x18] sm:$0xf]
          %v945 = vld [vmem:[%s5 + $0x1c] sm:$0xf]
          %v946 = vld [vmem:[%s5 + $0x20] sm:$0xf]
          %v947 = vld [vmem:[%s5 + $0x24] sm:$0xf]
          %v948 = vld [vmem:[%s5 + $0x28] sm:$0xf]
          %v949 = vld [vmem:[%s5 + $0x2c] sm:$0xf]
          %v950 = vld [vmem:[%s5 + $0x30] sm:$0xf]
          %v951 = vld [vmem:[%s5 + $0x34] sm:$0xf]
          %v952 = vld [vmem:[%s5 + $0x38] sm:$0xf]
          %v953 = vld [vmem:[%s5 + $0x3c] sm:$0xf]
          %v954 = vld [vmem:[%s6] sm:$0x1]
          %v956 = vlaneseq
          %v957 = vshrl.u32 %v956, 7
          %v958 = vsub.s32 0, %v957
          %v959 = vrot.slane %v954, %v958
          %v977 = vunpack.c.l.b16 %v938
          %v978 = vunpack.c.l.b16 %v939
          %v979 = vunpack.c.l.b16 %v940
          %v980 = vunpack.c.l.b16 %v941
          %v981 = vunpack.c.l.b16 %v942
          %v982 = vunpack.c.l.b16 %v943
          %v983 = vunpack.c.l.b16 %v944
          %v984 = vunpack.c.l.b16 %v945
          %v985 = vunpack.c.l.b16 %v946
          %v986 = vunpack.c.l.b16 %v947
          %v987 = vunpack.c.l.b16 %v948
          %v988 = vunpack.c.l.b16 %v949
          %v989 = vunpack.c.l.b16 %v950
          %v990 = vunpack.c.l.b16 %v951
          %v991 = vunpack.c.l.b16 %v952
          %v992 = vunpack.c.l.b16 %v953
          %v993 = vpack.c.b16 %v978, %v977
          %v994 = vpack.c.b16 %v980, %v979
          %v995 = vpack.c.b16 %v982, %v981
          %v996 = vpack.c.b16 %v984, %v983
          %v997 = vpack.c.b16 %v986, %v985
          %v998 = vpack.c.b16 %v988, %v987
          %v999 = vpack.c.b16 %v990, %v989
          %v1000 = vpack.c.b16 %v992, %v991
          %1009 = vmatprep.subr.bf16.mxu0 0
          %1010 = vmatpush1.bf16.msra.mxu0 %v993
          %1011 = vmatprep.subr.bf16.mxu0 0
          %1012 = vmatpush1.bf16.msra.mxu0 %v994
          %1013 = vmatprep.subr.bf16.mxu0 0
          %1014 = vmatpush1.bf16.msra.mxu0 %v995
          %1015 = vmatprep.subr.bf16.mxu0 0
          %1016 = vmatpush1.bf16.msra.mxu0 %v996
          %1017 = vmatprep.subr.bf16.mxu0 0
          %1018 = vmatpush1.bf16.msra.mxu0 %v997
          %1019 = vmatprep.subr.bf16.mxu0 0
          %1020 = vmatpush1.bf16.msra.mxu0 %v998
          %1021 = vmatprep.subr.bf16.mxu0 0
          %1022 = vmatpush1.bf16.msra.mxu0 %v999
          %1023 = vmatprep.subr.bf16.mxu0 0
          %1024 = vmatpush1.bf16.msra.mxu0 %v1000
          %1025 = vmatprep.subr.bf16.mxu0 0
          %1026 = vmatpush1.bf16.msra.mxu0 0
          %1027 = vmatprep.subr.bf16.mxu0 0
          %1028 = vmatpush1.bf16.msra.mxu0 0
          %1029 = vmatprep.subr.bf16.mxu0 0
          %1030 = vmatpush1.bf16.msra.mxu0 0
          %1031 = vmatprep.subr.bf16.mxu0 0
          %1032 = vmatpush1.bf16.msra.mxu0 0
          %1033 = vmatprep.subr.bf16.mxu0 0
          %1034 = vmatpush1.bf16.msra.mxu0 0
          %1035 = vmatprep.subr.bf16.mxu0 0
          %1036 = vmatpush1.bf16.msra.mxu0 0
          %1037 = vmatprep.subr.bf16.mxu0 0
          %1038 = vmatpush1.bf16.msra.mxu0 0
          %1039 = vmatprep.subr.bf16.mxu0 0
          %1040 = vmatpush1.bf16.msra.mxu0 0
          %1041 = vmatprep.mubr.bf16.mxu0 0
          %1042 = vmatmul.mubr.bf16.gmra.mrb[0].mxu0 %v925
          %v1043 = vpop.f32.mrb[0].mxu0
          %v1044 = vadd.f32 %v959, %v1043
          %v1045 = vpop.f32.mrb[0].mxu0
          %v1046 = vpop.f32.mrb[0].mxu0
          %v1047 = vadd.f32 %v959, %v1046
          %v1048 = vpop.f32.mrb[0].mxu0
          %1049 = vmatprep.mubr.bf16.mxu0 0
          %1050 = vmatmul.mubr.bf16.gmra.mrb[0].mxu0 %v926
          %v1051 = vpop.f32.mrb[0].mxu0
          %v1052 = vadd.f32 %v959, %v1051
          %v1053 = vpop.f32.mrb[0].mxu0
          %v1054 = vpop.f32.mrb[0].mxu0
          %v1055 = vadd.f32 %v959, %v1054
          %v1056 = vpop.f32.mrb[0].mxu0
          %1057 = vmatprep.mubr.bf16.mxu0 0
          %1058 = vmatmul.mubr.bf16.gmra.mrb[0].mxu0 %v927
          %v1059 = vpop.f32.mrb[0].mxu0
          %v1060 = vadd.f32 %v959, %v1059
          %v1061 = vpop.f32.mrb[0].mxu0
          %v1062 = vpop.f32.mrb[0].mxu0
          %v1063 = vadd.f32 %v959, %v1062
          %v1064 = vpop.f32.mrb[0].mxu0
          %1065 = vmatprep.mubr.bf16.mxu0 0
          %1066 = vmatmul.mubr.bf16.gmra.mrb[0].mxu0 %v928
          %v1067 = vpop.f32.mrb[0].mxu0
          %v1068 = vadd.f32 %v959, %v1067
          %v1069 = vpop.f32.mrb[0].mxu0
          %v1070 = vpop.f32.mrb[0].mxu0
          %v1071 = vadd.f32 %v959, %v1070
          %v1072 = vpop.f32.mrb[0].mxu0
          %1073 = vmatprep.mubr.bf16.mxu0 0
          %1074 = vmatmul.mubr.bf16.gmra.mrb[0].mxu0 %v929
          %v1075 = vpop.f32.mrb[0].mxu0
          %v1076 = vadd.f32 %v959, %v1075
          %v1077 = vpop.f32.mrb[0].mxu0
          %v1078 = vpop.f32.mrb[0].mxu0
          %v1079 = vadd.f32 %v959, %v1078
          %v1080 = vpop.f32.mrb[0].mxu0
          %1081 = vmatprep.mubr.bf16.mxu0 0
          %1082 = vmatmul.mubr.bf16.gmra.mrb[0].mxu0 %v930
          %v1083 = vpop.f32.mrb[0].mxu0
          %v1084 = vadd.f32 %v959, %v1083
          %v1085 = vpop.f32.mrb[0].mxu0
          %v1086 = vpop.f32.mrb[0].mxu0
          %v1087 = vadd.f32 %v959, %v1086
          %v1088 = vpop.f32.mrb[0].mxu0
          %1089 = vmatprep.mubr.bf16.mxu0 0
          %1090 = vmatmul.mubr.bf16.gmra.mrb[0].mxu0 %v931
          %v1091 = vpop.f32.mrb[0].mxu0
          %v1092 = vadd.f32 %v959, %v1091
          %v1093 = vpop.f32.mrb[0].mxu0
          %v1094 = vpop.f32.mrb[0].mxu0
          %v1095 = vadd.f32 %v959, %v1094
          %v1096 = vpop.f32.mrb[0].mxu0
          %1097 = vmatprep.mubr.bf16.mxu0 0
          %1098 = vmatmul.mubr.bf16.gmra.mrb[0].mxu0 %v932
          %v1099 = vpop.f32.mrb[0].mxu0
          %v1100 = vadd.f32 %v959, %v1099
          %v1101 = vpop.f32.mrb[0].mxu0
          %v1102 = vpop.f32.mrb[0].mxu0
          %v1103 = vadd.f32 %v959, %v1102
          %v1104 = vpop.f32.mrb[0].mxu0
          %1105 = vmatprep.mubr.bf16.mxu0 0
          %1106 = vmatmul.mubr.bf16.gmra.mrb[0].mxu0 %v933
          %v1107 = vpop.f32.mrb[0].mxu0
          %v1108 = vadd.f32 %v959, %v1107
          %v1109 = vpop.f32.mrb[0].mxu0
          %v1110 = vpop.f32.mrb[0].mxu0
          %v1111 = vadd.f32 %v959, %v1110
          %v1112 = vpop.f32.mrb[0].mxu0
          %1113 = vmatprep.mubr.bf16.mxu0 0
          %1114 = vmatmul.mubr.bf16.gmra.mrb[0].mxu0 %v934
          %v1115 = vpop.f32.mrb[0].mxu0
          %v1116 = vadd.f32 %v959, %v1115
          %v1117 = vpop.f32.mrb[0].mxu0
          %v1118 = vpop.f32.mrb[0].mxu0
          %v1119 = vadd.f32 %v959, %v1118
          %v1120 = vpop.f32.mrb[0].mxu0
          %1121 = vmatprep.mubr.bf16.mxu0 0
          %1122 = vmatmul.mubr.bf16.gmra.mrb[0].mxu0 %v935
          %v1123 = vpop.f32.mrb[0].mxu0
          %v1124 = vadd.f32 %v959, %v1123
          %v1125 = vpop.f32.mrb[0].mxu0
          %v1126 = vpop.f32.mrb[0].mxu0
          %v1127 = vadd.f32 %v959, %v1126
          %v1128 = vpop.f32.mrb[0].mxu0
          %1129 = vmatprep.mubr.bf16.mxu0 0
          %1130 = vmatmul.mubr.bf16.gmra.mrb[0].mxu0 %v936
          %v1131 = vpop.f32.mrb[0].mxu0
          %v1132 = vadd.f32 %v959, %v1131
          %v1133 = vpop.f32.mrb[0].mxu0
          %v1134 = vpop.f32.mrb[0].mxu0
          %v1135 = vadd.f32 %v959, %v1134
          %v1136 = vpop.f32.mrb[0].mxu0
          %1137 = vmatprep.mubr.bf16.mxu0 0
          %1138 = vmatmul.mubr.bf16.gmra.mrb[0].mxu0 %v937
          %v1139 = vpop.f32.mrb[0].mxu0
          %v1140 = vadd.f32 %v959, %v1139
          %v1141 = vpop.f32.mrb[0].mxu0
          %v1142 = vpop.f32.mrb[0].mxu0
          %v1143 = vpop.f32.mrb[0].mxu0
          %1144 = vdwg.mxu0
          %1145 = vst [vmem:[%s296] sm:$0xff] %v1044
          %1146 = vst [vmem:[%s296 + $0x8] sm:$0xff] %v1047
          %1147 = vst [vmem:[%s296 + $0x10] sm:$0xff] %v1052
          %1148 = vst [vmem:[%s296 + $0x18] sm:$0xff] %v1055
          %1149 = vst [vmem:[%s296 + $0x20] sm:$0xff] %v1060
          %1150 = vst [vmem:[%s296 + $0x28] sm:$0xff] %v1063
          %1151 = vst [vmem:[%s296 + $0x30] sm:$0xff] %v1068
          %1152 = vst [vmem:[%s296 + $0x38] sm:$0xff] %v1071
          %1153 = vst [vmem:[%s296 + $0x40] sm:$0xff] %v1076
          %1154 = vst [vmem:[%s296 + $0x48] sm:$0xff] %v1079
          %1155 = vst [vmem:[%s296 + $0x50] sm:$0xff] %v1084
          %1156 = vst [vmem:[%s296 + $0x58] sm:$0xff] %v1087
          %1157 = vst [vmem:[%s296 + $0x60] sm:$0xff] %v1092
          %1158 = vst [vmem:[%s296 + $0x68] sm:$0xff] %v1095
          %1159 = vst [vmem:[%s296 + $0x70] sm:$0xff] %v1100
          %1160 = vst [vmem:[%s296 + $0x78] sm:$0xff] %v1103
          %1161 = vst [vmem:[%s296 + $0x80] sm:$0xff] %v1108
          %1162 = vst [vmem:[%s296 + $0x88] sm:$0xff] %v1111
          %1163 = vst [vmem:[%s296 + $0x90] sm:$0xff] %v1116
          %1164 = vst [vmem:[%s296 + $0x98] sm:$0xff] %v1119
          %1165 = vst [vmem:[%s296 + $0xa0] sm:$0xff] %v1124
          %1166 = vst [vmem:[%s296 + $0xa8] sm:$0xff] %v1127
          %1167 = vst [vmem:[%s296 + $0xb0] sm:$0xff] %v1132
          %1168 = vst [vmem:[%s296 + $0xb8] sm:$0xff] %v1135
          %1169 = vst [vmem:[%s296 + $0xc0] sm:$0xff] %v1140
        $region60: #{tpu_custom_call.1} parent=47 // pred_fallthru
          _
        %s1170 = sand.u32 %s199, 1
        %s1171 = scalar_lea.sflag [#allocation8], %s1170
        %s1172 = sand.u32 %s199, 1
        %s1173 = smul.addr %s1172, 200
        %s1174 = scalar_lea.vmem [#allocation7], %s1173
        // Predicated region
        $region65: #{tpu_custom_call.1} parent=47 // pred_check
          %p1175 = pneg %p209
        $region66: #{tpu_custom_call.1} parent=47 // pred_check_branch
          %1177 = sbr.rel (%p1175) target = $region68
        $region67: #{tpu_custom_call.1} parent=47 // pred_region
          %s1178 = smul.u32 %s26, %s25
          %s1179 = smul.u32 25, %s1178
          %s1181 = ssub.s32 3200, 3200
          %1182 = vsyncadd %s1171, %s1181
          %s1183 = smul.addr %s1179, 128
          %s1184 = scalar_lea.hbm %s7, %s1183
          %s1185 = sshll.u32 %s1174, 4
          %s1186 = int_to_ptr.vmem [resolvable:$true] %s1185
          %1191 = dma.vmem_to_hbm [thread:$0]  %s1186, 3200, %s1184, %s1171, 128, 128, 8
        $region68: #{tpu_custom_call.1} parent=47 // pred_fallthru
          _
      $region48: #{tpu_custom_call.1} parent=5 // pred_fallthru
        _
      %p1192 = scmp.le.s32.totalorder 2, %s16
      // Predicated region
      $region69: #{tpu_custom_call.1} parent=5 // pred_check
        %p1193 = pneg %p1192
      $region70: #{tpu_custom_call.1} parent=5 // pred_check_branch
        %1195 = sbr.rel (%p1193) target = $region72
      $region71: #{tpu_custom_call.1} parent=5 // pred_region
        %s1196 = ssub.s32 %s16, 2
        // Predicated region
        $region73: #{tpu_custom_call.1} parent=71 // pred_check
          %p1197 = pneg %p215
        $region74: #{tpu_custom_call.1} parent=71 // pred_check_branch
          %1199 = sbr.rel (%p1197) target = $region76
        $region75: #{tpu_custom_call.1} parent=71 // pred_region
          %s1200 = sand.u32 %s200, 1
          %s1201 = scalar_lea.sflag [#allocation8], %s1200
          %s1202 = sand.u32 %s200, 1
          %s1203 = smul.addr %s1202, 200
          %s1204 = scalar_lea.vmem [#allocation7], %s1203
          %1205 = dma.done %s1201, 3200
        $region76: #{tpu_custom_call.1} parent=71 // pred_fallthru
          _
      $region72: #{tpu_custom_call.1} parent=5 // pred_fallthru
        _
    $region6: #{tpu_custom_call.1} parent=1 // loop_footer
      %s20 = sadd.s32 1, %s16
    $region7: #{tpu_custom_call.1} parent=1 // loop_footer_branch
      %15 = sbr.rel target = $region3
    $region8: #{tpu_custom_call.1} parent=1 // loop_exit
      _
    %1206 = vsyncpa [#allocation8], 1
    %s1207 = scalar_lea.sflag [#allocation8], 1
    %1208 = vsyncpa %s1207, 1

</llo_original>
